<compile_context>
chip_gen: v7x
topology: tpu7x:2x2x1
jax: 0.10.0
libtpu: 0.0.40
codegen_flags: <defaults>
</compile_context>

<pallas_src>
import functools

import jax
import jax.numpy as jnp
from jax.experimental import pallas as pl
from jax.experimental.pallas import tpu as pltpu


def _round_up(x, m):
    return ((x + m - 1) // m) * m


def _pad_to(x, target_shape, value=0.0):
    pads = [(0, t - s) for s, t in zip(x.shape, target_shape)]
    return jnp.pad(x, pads, constant_values=value)


def _attn_decoder_kernel(tok_ref,      # SMEM scalar prefetch: (T,) int32 token ids
                         emb_ref,      # (1, 1, Hp)  gathered embedding row (this step's token)
                         h0_ref,       # (1, Hp)     initial hidden state
                         enc_ref,      # (Lp, Hp)    encoder outputs
                         wae_ref,      # (Hp, Lp)    attn weight, embedded half, transposed
                         wah_ref,      # (Hp, Lp)    attn weight, hidden half, transposed
                         ba_ref,       # (1, Lp)     attn bias (-1e30 in padded cols)
                         wce_ref,      # (Hp, Hp)    attn_combine weight, embedded half, transposed
                         wca_ref,      # (Hp, Hp)    attn_combine weight, attn_applied half, transposed
                         bc_ref,       # (1, Hp)     attn_combine bias
                         wih_ref,      # (3, Hp, Hp) GRU input weights [r, z, n], each transposed
                         whh_ref,      # (3, Hp, Hp) GRU hidden weights [r, z, n], each transposed
                         gb_ref,       # (4, 1, Hp)  [b_r(ih+hh), b_z(ih+hh), b_in, b_hn]
                         wout_ref,     # (Hp, Op)    output Linear weight, transposed
                         bout_ref,     # (1, Op)     output bias (-1e30 in padded cols)
                         logp_ref,     # out: (1, 1, Op) per-step log-softmax
                         attnw_ref,    # out: (1, 1, Lp) per-step attention weights
                         hout_ref,     # out: (1, Hp)    final hidden state
                         h_scr):       # VMEM scratch: (1, Hp) hidden carried across grid steps
    @pl.when(pl.program_id(0) == 0)
    def _():
        h_scr[...] = h0_ref[...]

    f32 = jnp.float32
    dot = lambda a, b: jnp.dot(a, b, preferred_element_type=f32)

    emb = emb_ref[0]            # (1, Hp)
    h = h_scr[...]              # (1, Hp)

    # attn_weights = softmax(Linear([emb, h]))  -- concat avoided via split weights.
    attn_logits = dot(emb, wae_ref[...]) + dot(h, wah_ref[...]) + ba_ref[...]
    am = jnp.max(attn_logits, axis=-1, keepdims=True)
    ae = jnp.exp(attn_logits - am)                       # padded cols -> exp(-1e30) == 0
    attn_w = ae / jnp.sum(ae, axis=-1, keepdims=True)    # (1, Lp)

    # attn_applied = attn_w @ encoder_outputs
    attn_applied = dot(attn_w, enc_ref[...])             # (1, Hp)

    # output = relu(attn_combine([emb, attn_applied]))  -- split weights again.
    x = jnp.maximum(
        dot(emb, wce_ref[...]) + dot(attn_applied, wca_ref[...]) + bc_ref[...], 0.0)

    # Single GRU step, PyTorch gate order (r, z, n), whole-vreg per-gate matmuls.
    r = jax.nn.sigmoid(dot(x, wih_ref[0]) + dot(h, whh_ref[0]) + gb_ref[0])
    z = jax.nn.sigmoid(dot(x, wih_ref[1]) + dot(h, whh_ref[1]) + gb_ref[1])
    n = jnp.tanh(dot(x, wih_ref[2]) + gb_ref[2] + r * (dot(h, whh_ref[2]) + gb_ref[3]))
    h_new = (1.0 - z) * n + z * h
    h_scr[...] = h_new
    hout_ref[...] = h_new       # constant block -> written back once at grid end (last step)

    # log_softmax(out(h_new)); padded vocab cols carry -1e30 bias -> contribute 0.
    logits = dot(h_new, wout_ref[...]) + bout_ref[...]
    m = jnp.max(logits, axis=-1, keepdims=True)
    s = logits - m
    lse = jnp.log(jnp.sum(jnp.exp(s), axis=-1, keepdims=True))
    logp_ref[0] = s - lse
    attnw_ref[0] = attn_w


def attn_decoder_log_forward(tokens, hidden, encoder_outputs, params):
    """Run T teacher-forced decoder steps in one pallas_call.

    tokens:          (T,) int32 token ids (one per step)
    hidden:          (1, 1, H) float32 initial hidden state
    encoder_outputs: (L, H) float32
    Returns (logp (T, O), attn_weights (T, L), hidden (1, 1, H))."""
    H = params["hidden_size"]
    O = params["output_size"]
    L = params["max_length"]
    T = int(tokens.shape[0])

    Hp = _round_up(H, 128)
    Lp = _round_up(L, 128)
    Op = _round_up(O, 128)
    NEG = -1e30

    # ---- build padded, pre-transposed operands (done once per call) --------
    emb3 = _pad_to(params["embedding"], (O, Hp))[:, None, :]          # (O, 1, Hp)
    h0 = _pad_to(hidden.reshape(1, H), (1, Hp))                       # (1, Hp)
    enc = _pad_to(encoder_outputs, (Lp, Hp))                          # (Lp, Hp)

    attn_w = params["attn_w"]                                         # (L, 2H)
    wae = _pad_to(attn_w[:, :H].T, (Hp, Lp))
    wah = _pad_to(attn_w[:, H:].T, (Hp, Lp))
    ba = _pad_to(params["attn_b"][None, :], (1, Lp), value=NEG)

    comb_w = params["comb_w"]                                         # (H, 2H)
    wce = _pad_to(comb_w[:, :H].T, (Hp, Hp))
    wca = _pad_to(comb_w[:, H:].T, (Hp, Hp))
    bc = _pad_to(params["comb_b"][None, :], (1, Hp))

    w_ih, w_hh = params["w_ih"], params["w_hh"]                       # (3H, H) each
    wih_s = jnp.stack([_pad_to(w_ih[k * H:(k + 1) * H, :].T, (Hp, Hp)) for k in range(3)])
    whh_s = jnp.stack([_pad_to(w_hh[k * H:(k + 1) * H, :].T, (Hp, Hp)) for k in range(3)])
    b_ih, b_hh = params["b_ih"], params["b_hh"]
    gb = jnp.stack([
        _pad_to((b_ih[:H] + b_hh[:H])[None, :], (1, Hp)),             # b_r (fused on host)
        _pad_to((b_ih[H:2 * H] + b_hh[H:2 * H])[None, :], (1, Hp)),   # b_z (fused on host)
        _pad_to(b_ih[2 * H:][None, :], (1, Hp)),                      # b_in
        _pad_to(b_hh[2 * H:][None, :], (1, Hp)),                      # b_hn
    ])                                                                # (4, 1, Hp)

    wout = _pad_to(params["out_w"].T, (Hp, Op))
    bout = _pad_to(params["out_b"][None, :], (1, Op), value=NEG)

    tok = jnp.asarray(tokens, jnp.int32).reshape(T)

    const2 = lambda i, tok: (0, 0)
    const3 = lambda i, tok: (0, 0, 0)

    grid_spec = pltpu.PrefetchScalarGridSpec(
        num_scalar_prefetch=1,
        grid=(T,),
        in_specs=[
            pl.BlockSpec((1, 1, Hp), lambda i, tok: (tok[i], 0, 0)),  # embedding row gather
            pl.BlockSpec((1, Hp), const2),                            # h0
            pl.BlockSpec((Lp, Hp), const2),                           # encoder_outputs (resident)
            pl.BlockSpec((Hp, Lp), const2),                           # attn W (emb half)
            pl.BlockSpec((Hp, Lp), const2),                           # attn W (hidden half)
            pl.BlockSpec((1, Lp), const2),                            # attn bias
            pl.BlockSpec((Hp, Hp), const2),                           # combine W (emb half)
            pl.BlockSpec((Hp, Hp), const2),                           # combine W (attn half)
            pl.BlockSpec((1, Hp), const2),                            # combine bias
            pl.BlockSpec((3, Hp, Hp), const3),                        # GRU W_ih [r,z,n]
            pl.BlockSpec((3, Hp, Hp), const3),                        # GRU W_hh [r,z,n]
            pl.BlockSpec((4, 1, Hp), const3),                         # GRU biases
            pl.BlockSpec((Hp, Op), const2),                           # out W
            pl.BlockSpec((1, Op), const2),                            # out bias
        ],
        out_specs=[
            pl.BlockSpec((1, 1, Op), lambda i, tok: (i, 0, 0)),       # per-step log-softmax
            pl.BlockSpec((1, 1, Lp), lambda i, tok: (i, 0, 0)),       # per-step attn weights
            pl.BlockSpec((1, Hp), const2),                            # final hidden
        ],
        scratch_shapes=[pltpu.VMEM((1, Hp), jnp.float32)],            # hidden carry
    )

    logp_p, attn_p, h_p = pl.pallas_call(
        _attn_decoder_kernel,
        out_shape=(
            jax.ShapeDtypeStruct((T, 1, Op), jnp.float32),
            jax.ShapeDtypeStruct((T, 1, Lp), jnp.float32),
            jax.ShapeDtypeStruct((1, Hp), jnp.float32),
        ),
        grid_spec=grid_spec,
        compiler_params=pltpu.CompilerParams(dimension_semantics=("arbitrary",)),
    )(tok, emb3, h0, enc, wae, wah, ba, wce, wca, bc, wih_s, whh_s, gb, wout, bout)

    # Strip the lane padding back off.
    logp = logp_p[:, 0, :O]
    attn = attn_p[:, 0, :L]
    h_new = h_p[:, :H].reshape(1, 1, H)
    return logp, attn, h_new


def _ref_forward(tokens, hidden, encoder_outputs, p):
    """Pure-JAX reference mirroring the PyTorch forward, unrolled over T steps."""
    H = p["hidden_size"]
    h = hidden.reshape(1, H)
    logps, attns = [], []
    for t in range(tokens.shape[0]):
        emb = p["embedding"][tokens[t]][None, :]                       # (1, H)
        cat1 = jnp.concatenate([emb, h], axis=1)
        aw = jax.nn.softmax(cat1 @ p["attn_w"].T + p["attn_b"][None, :], axis=1)
        attn_applied = aw @ encoder_outputs                            # (1, H)
        cat2 = jnp.concatenate([emb, attn_applied], axis=1)
        x = jnp.maximum(cat2 @ p["comb_w"].T + p["comb_b"][None, :], 0.0)
        gi = x @ p["w_ih"].T + p["b_ih"][None, :]
        gh = h @ p["w_hh"].T + p["b_hh"][None, :]
        r = jax.nn.sigmoid(gi[:, :H] + gh[:, :H])
        z = jax.nn.sigmoid(gi[:, H:2 * H] + gh[:, H:2 * H])
        n = jnp.tanh(gi[:, 2 * H:] + r * gh[:, 2 * H:])
        h = (1.0 - z) * n + z * h
        logits = h @ p["out_w"].T + p["out_b"][None, :]
        logps.append(jax.nn.log_softmax(logits, axis=1))
        attns.append(aw)
    return (jnp.concatenate(logps, axis=0),
            jnp.concatenate(attns, axis=0),
            h.reshape(1, 1, H))


def make_params(hidden_size, output_size, max_length, key):
    H, O, L = hidden_size, output_size, max_length
    ks = jax.random.split(key, 11)

    def u(k, shape, fan_in):
        s = 1.0 / jnp.sqrt(jnp.float32(fan_in))
        return jax.random.uniform(k, shape, jnp.float32, -s, s)

    return {
        "hidden_size": H,
        "output_size": O,
        "max_length": L,
        # nn.Embedding(output_size, hidden_size): N(0, 1)
        "embedding": jax.random.normal(ks[0], (O, H), jnp.float32),
        # nn.Linear(2H, L)
        "attn_w": u(ks[1], (L, 2 * H), 2 * H),
        "attn_b": u(ks[2], (L,), 2 * H),
        # nn.Linear(2H, H)
        "comb_w": u(ks[3], (H, 2 * H), 2 * H),
        "comb_b": u(ks[4], (H,), 2 * H),
        # nn.GRU(H, H): weights (3H, H), gate order [r | z | n]
        "w_ih": u(ks[5], (3 * H, H), H),
        "w_hh": u(ks[6], (3 * H, H), H),
        "b_ih": u(ks[7], (3 * H,), H),
        "b_hh": u(ks[8], (3 * H,), H),
        # nn.Linear(H, O)
        "out_w": u(ks[9], (O, H), H),
        "out_b": u(ks[10], (O,), H),
    }


if __name__ == "__main__":
    hidden_size = 32
    output_size = 24
    max_length = 10
    T = 6

    key = jax.random.PRNGKey(0)
    k_param, k_h, k_enc = jax.random.split(key, 3)
    params = make_params(hidden_size, output_size, max_length, k_param)

    tokens = jnp.array([3, 7, 1, 0, 11, 5], dtype=jnp.int32)
    hidden = 0.1 * jax.random.normal(k_h, (1, 1, hidden_size), jnp.float32)
    encoder_outputs = 0.1 * jax.random.normal(k_enc, (max_length, hidden_size), jnp.float32)

    logp, attn_w, h_new = attn_decoder_log_forward(tokens, hidden, encoder_outputs, params)
    jax.block_until_ready((logp, attn_w, h_new))

    ref_logp, ref_attn, ref_h = _ref_forward(tokens, hidden, encoder_outputs, params)
    assert logp.shape == (T, output_size)
    assert attn_w.shape == (T, max_length)
    assert h_new.shape == (1, 1, hidden_size)
    assert jnp.allclose(logp, ref_logp, atol=1e-2, rtol=1e-2)
    assert jnp.allclose(attn_w, ref_attn, atol=1e-2, rtol=1e-2)
    assert jnp.allclose(h_new, ref_h, atol=1e-2, rtol=1e-2)

    print("KERNEL_OK")
</pallas_src>

<mosaic_0001>
module attributes {stable_mosaic.version = 11 : i64} {
  func.func @_attn_decoder_kernel(%arg0: i32, %arg1: memref<6xi32, #tpu.memory_space<smem>>, %arg2: memref<1x1x128xf32, #tpu.memory_space<vmem>>, %arg3: memref<1x128xf32, #tpu.memory_space<vmem>>, %arg4: memref<128x128xf32, #tpu.memory_space<vmem>>, %arg5: memref<128x128xf32, #tpu.memory_space<vmem>>, %arg6: memref<128x128xf32, #tpu.memory_space<vmem>>, %arg7: memref<1x128xf32, #tpu.memory_space<vmem>>, %arg8: memref<128x128xf32, #tpu.memory_space<vmem>>, %arg9: memref<128x128xf32, #tpu.memory_space<vmem>>, %arg10: memref<1x128xf32, #tpu.memory_space<vmem>>, %arg11: memref<3x128x128xf32, #tpu.memory_space<vmem>>, %arg12: memref<3x128x128xf32, #tpu.memory_space<vmem>>, %arg13: memref<4x1x128xf32, #tpu.memory_space<vmem>>, %arg14: memref<128x128xf32, #tpu.memory_space<vmem>>, %arg15: memref<1x128xf32, #tpu.memory_space<vmem>>, %arg16: memref<1x1x128xf32, #tpu.memory_space<vmem>>, %arg17: memref<1x1x128xf32, #tpu.memory_space<vmem>>, %arg18: memref<1x128xf32, #tpu.memory_space<vmem>>, %arg19: memref<1x128xf32, #tpu.memory_space<vmem>>) attributes {dimension_semantics = [#tpu.dimension_semantics<arbitrary>], iteration_bounds = array<i64: 6>, scalar_prefetch = 1 : i64, scratch_operands = 1 : i64, tpu.core_type = #tpu.core_type<tc>, window_params = [{transform_indices = @transform_0, window_bounds = array<i64: 1, 1, 128>}, {pipeline_mode = #tpu.pipeline_mode<synchronous>, transform_indices = @transform_1, window_bounds = array<i64: 1, 128>}, {pipeline_mode = #tpu.pipeline_mode<synchronous>, transform_indices = @transform_2, window_bounds = array<i64: 128, 128>}, {pipeline_mode = #tpu.pipeline_mode<synchronous>, transform_indices = @transform_3, window_bounds = array<i64: 128, 128>}, {pipeline_mode = #tpu.pipeline_mode<synchronous>, transform_indices = @transform_4, window_bounds = array<i64: 128, 128>}, {pipeline_mode = #tpu.pipeline_mode<synchronous>, transform_indices = @transform_5, window_bounds = array<i64: 1, 128>}, {pipeline_mode = #tpu.pipeline_mode<synchronous>, transform_indices = @transform_6, window_bounds = array<i64: 128, 128>}, {pipeline_mode = #tpu.pipeline_mode<synchronous>, transform_indices = @transform_7, window_bounds = array<i64: 128, 128>}, {pipeline_mode = #tpu.pipeline_mode<synchronous>, transform_indices = @transform_8, window_bounds = array<i64: 1, 128>}, {pipeline_mode = #tpu.pipeline_mode<synchronous>, transform_indices = @transform_9, window_bounds = array<i64: 3, 128, 128>}, {pipeline_mode = #tpu.pipeline_mode<synchronous>, transform_indices = @transform_10, window_bounds = array<i64: 3, 128, 128>}, {pipeline_mode = #tpu.pipeline_mode<synchronous>, transform_indices = @transform_11, window_bounds = array<i64: 4, 1, 128>}, {pipeline_mode = #tpu.pipeline_mode<synchronous>, transform_indices = @transform_12, window_bounds = array<i64: 128, 128>}, {pipeline_mode = #tpu.pipeline_mode<synchronous>, transform_indices = @transform_13, window_bounds = array<i64: 1, 128>}, {transform_indices = @transform_14, window_bounds = array<i64: 1, 1, 128>}, {transform_indices = @transform_15, window_bounds = array<i64: 1, 1, 128>}, {pipeline_mode = #tpu.pipeline_mode<synchronous>, transform_indices = @transform_16, window_bounds = array<i64: 1, 128>}]} {
    %c0_i32 = arith.constant 0 : i32
    %0 = arith.cmpi eq, %arg0, %c0_i32 : i32
    %1 = arith.extui %0 : i1 to i32
    %c0_i32_0 = arith.constant 0 : i32
    %2 = arith.cmpi ne, %1, %c0_i32_0 : i32
    scf.if %2 {
      %c0_79 = arith.constant 0 : index
      %c0_80 = arith.constant 0 : index
      %105 = vector.load %arg3[%c0_79, %c0_80] : memref<1x128xf32, #tpu.memory_space<vmem>>, vector<1x128xf32>
      %c0_81 = arith.constant 0 : index
      %c0_82 = arith.constant 0 : index
      %106 = vector.load %arg19[%c0_81, %c0_82] : memref<1x128xf32, #tpu.memory_space<vmem>>, vector<1x128xf32>
      tpu.vector_store %arg19[%c0_81, %c0_82], %105 {strides = array<i32>} : memref<1x128xf32, #tpu.memory_space<vmem>>, vector<1x128xf32>,
    } else {
    }
    %c0 = arith.constant 0 : index
    %c0_1 = arith.constant 0 : index
    %c0_2 = arith.constant 0 : index
    %3 = vector.load %arg2[%c0, %c0_1, %c0_2] : memref<1x1x128xf32, #tpu.memory_space<vmem>>, vector<1x1x128xf32>
    %4 = vector.shape_cast %3 : vector<1x1x128xf32> to vector<1x128xf32>
    %c0_3 = arith.constant 0 : index
    %c0_4 = arith.constant 0 : index
    %5 = vector.load %arg19[%c0_3, %c0_4] : memref<1x128xf32, #tpu.memory_space<vmem>>, vector<1x128xf32>
    %c0_5 = arith.constant 0 : index
    %c0_6 = arith.constant 0 : index
    %6 = vector.load %arg5[%c0_5, %c0_6] : memref<128x128xf32, #tpu.memory_space<vmem>>, vector<128x128xf32>
    %cst = arith.constant dense<0.000000e+00> : vector<1x128xf32>
    %7 = tpu.matmul %4, %6, %cst {dimension_numbers = #tpu.dot_dimension_numbers<[1], [0], [0], [1], [0, 0, 1, 1], [], []>} : vector<1x128xf32>, vector<128x128xf32>, vector<1x128xf32> -> vector<1x128xf32>
    %c0_7 = arith.constant 0 : index
    %c0_8 = arith.constant 0 : index
    %8 = vector.load %arg6[%c0_7, %c0_8] : memref<128x128xf32, #tpu.memory_space<vmem>>, vector<128x128xf32>
    %cst_9 = arith.constant dense<0.000000e+00> : vector<1x128xf32>
    %9 = tpu.matmul %5, %8, %cst_9 {dimension_numbers = #tpu.dot_dimension_numbers<[1], [0], [0], [1], [0, 0, 1, 1], [], []>} : vector<1x128xf32>, vector<128x128xf32>, vector<1x128xf32> -> vector<1x128xf32>
    %10 = arith.addf %7, %9 : vector<1x128xf32>
    %c0_10 = arith.constant 0 : index
    %c0_11 = arith.constant 0 : index
    %11 = vector.load %arg7[%c0_10, %c0_11] : memref<1x128xf32, #tpu.memory_space<vmem>>, vector<1x128xf32>
    %12 = arith.addf %10, %11 : vector<1x128xf32>
    %cst_12 = arith.constant dense<0xFF800000> : vector<1xf32>
    %13 = vector.multi_reduction <maximumf>, %12, %cst_12 [1] : vector<1x128xf32> to vector<1xf32>
    %14 = vector.shape_cast %13 : vector<1xf32> to vector<1x1xf32>
    %15 = vector.broadcast %14 : vector<1x1xf32> to vector<1x128xf32>
    %16 = arith.subf %12, %15 : vector<1x128xf32>
    %17 = math.exp %16 : vector<1x128xf32>
    %cst_13 = arith.constant dense<0.000000e+00> : vector<1xf32>
    %18 = vector.multi_reduction <add>, %17, %cst_13 [1] : vector<1x128xf32> to vector<1xf32>
    %19 = vector.shape_cast %18 : vector<1xf32> to vector<1x1xf32>
    %20 = vector.broadcast %19 : vector<1x1xf32> to vector<1x128xf32>
    %21 = arith.divf %17, %20 : vector<1x128xf32>
    %c0_14 = arith.constant 0 : index
    %c0_15 = arith.constant 0 : index
    %22 = vector.load %arg4[%c0_14, %c0_15] : memref<128x128xf32, #tpu.memory_space<vmem>>, vector<128x128xf32>
    %cst_16 = arith.constant dense<0.000000e+00> : vector<1x128xf32>
    %23 = tpu.matmul %21, %22, %cst_16 {dimension_numbers = #tpu.dot_dimension_numbers<[1], [0], [0], [1], [0, 0, 1, 1], [], []>} : vector<1x128xf32>, vector<128x128xf32>, vector<1x128xf32> -> vector<1x128xf32>
    %c0_17 = arith.constant 0 : index
    %c0_18 = arith.constant 0 : index
    %24 = vector.load %arg8[%c0_17, %c0_18] : memref<128x128xf32, #tpu.memory_space<vmem>>, vector<128x128xf32>
    %cst_19 = arith.constant dense<0.000000e+00> : vector<1x128xf32>
    %25 = tpu.matmul %4, %24, %cst_19 {dimension_numbers = #tpu.dot_dimension_numbers<[1], [0], [0], [1], [0, 0, 1, 1], [], []>} : vector<1x128xf32>, vector<128x128xf32>, vector<1x128xf32> -> vector<1x128xf32>
    %c0_20 = arith.constant 0 : index
    %c0_21 = arith.constant 0 : index
    %26 = vector.load %arg9[%c0_20, %c0_21] : memref<128x128xf32, #tpu.memory_space<vmem>>, vector<128x128xf32>
    %cst_22 = arith.constant dense<0.000000e+00> : vector<1x128xf32>
    %27 = tpu.matmul %23, %26, %cst_22 {dimension_numbers = #tpu.dot_dimension_numbers<[1], [0], [0], [1], [0, 0, 1, 1], [], []>} : vector<1x128xf32>, vector<128x128xf32>, vector<1x128xf32> -> vector<1x128xf32>
    %28 = arith.addf %25, %27 : vector<1x128xf32>
    %c0_23 = arith.constant 0 : index
    %c0_24 = arith.constant 0 : index
    %29 = vector.load %arg10[%c0_23, %c0_24] : memref<1x128xf32, #tpu.memory_space<vmem>>, vector<1x128xf32>
    %30 = arith.addf %28, %29 : vector<1x128xf32>
    %cst_25 = arith.constant 0.000000e+00 : f32
    %31 = vector.broadcast %cst_25 : f32 to vector<1x128xf32>
    %32 = arith.maximumf %30, %31 : vector<1x128xf32>
    %c0_26 = arith.constant 0 : index
    %c0_27 = arith.constant 0 : index
    %c0_28 = arith.constant 0 : index
    %33 = vector.load %arg11[%c0_26, %c0_27, %c0_28] : memref<3x128x128xf32, #tpu.memory_space<vmem>>, vector<1x128x128xf32>
    %34 = vector.shape_cast %33 : vector<1x128x128xf32> to vector<128x128xf32>
    %cst_29 = arith.constant dense<0.000000e+00> : vector<1x128xf32>
    %35 = tpu.matmul %32, %34, %cst_29 {dimension_numbers = #tpu.dot_dimension_numbers<[1], [0], [0], [1], [0, 0, 1, 1], [], []>} : vector<1x128xf32>, vector<128x128xf32>, vector<1x128xf32> -> vector<1x128xf32>
    %c0_30 = arith.constant 0 : index
    %c0_31 = arith.constant 0 : index
    %c0_32 = arith.constant 0 : index
    %36 = vector.load %arg12[%c0_30, %c0_31, %c0_32] : memref<3x128x128xf32, #tpu.memory_space<vmem>>, vector<1x128x128xf32>
    %37 = vector.shape_cast %36 : vector<1x128x128xf32> to vector<128x128xf32>
    %cst_33 = arith.constant dense<0.000000e+00> : vector<1x128xf32>
    %38 = tpu.matmul %5, %37, %cst_33 {dimension_numbers = #tpu.dot_dimension_numbers<[1], [0], [0], [1], [0, 0, 1, 1], [], []>} : vector<1x128xf32>, vector<128x128xf32>, vector<1x128xf32> -> vector<1x128xf32>
    %39 = arith.addf %35, %38 : vector<1x128xf32>
    %c0_34 = arith.constant 0 : index
    %c0_35 = arith.constant 0 : index
    %c0_36 = arith.constant 0 : index
    %40 = vector.load %arg13[%c0_34, %c0_35, %c0_36] : memref<4x1x128xf32, #tpu.memory_space<vmem>>, vector<1x1x128xf32>
    %41 = vector.shape_cast %40 : vector<1x1x128xf32> to vector<1x128xf32>
    %42 = arith.addf %39, %41 : vector<1x128xf32>
    %43 = arith.negf %42 : vector<1x128xf32>
    %44 = math.exp %43 : vector<1x128xf32>
    %cst_37 = arith.constant 1.000000e+00 : f32
    %45 = vector.broadcast %cst_37 : f32 to vector<1x128xf32>
    %46 = arith.addf %45, %44 : vector<1x128xf32>
    %47 = arith.divf %45, %46 : vector<1x128xf32>
    %c1 = arith.constant 1 : index
    %c0_38 = arith.constant 0 : index
    %c0_39 = arith.constant 0 : index
    %48 = vector.load %arg11[%c1, %c0_38, %c0_39] : memref<3x128x128xf32, #tpu.memory_space<vmem>>, vector<1x128x128xf32>
    %49 = vector.shape_cast %48 : vector<1x128x128xf32> to vector<128x128xf32>
    %cst_40 = arith.constant dense<0.000000e+00> : vector<1x128xf32>
    %50 = tpu.matmul %32, %49, %cst_40 {dimension_numbers = #tpu.dot_dimension_numbers<[1], [0], [0], [1], [0, 0, 1, 1], [], []>} : vector<1x128xf32>, vector<128x128xf32>, vector<1x128xf32> -> vector<1x128xf32>
    %c1_41 = arith.constant 1 : index
    %c0_42 = arith.constant 0 : index
    %c0_43 = arith.constant 0 : index
    %51 = vector.load %arg12[%c1_41, %c0_42, %c0_43] : memref<3x128x128xf32, #tpu.memory_space<vmem>>, vector<1x128x128xf32>
    %52 = vector.shape_cast %51 : vector<1x128x128xf32> to vector<128x128xf32>
    %cst_44 = arith.constant dense<0.000000e+00> : vector<1x128xf32>
    %53 = tpu.matmul %5, %52, %cst_44 {dimension_numbers = #tpu.dot_dimension_numbers<[1], [0], [0], [1], [0, 0, 1, 1], [], []>} : vector<1x128xf32>, vector<128x128xf32>, vector<1x128xf32> -> vector<1x128xf32>
    %54 = arith.addf %50, %53 : vector<1x128xf32>
    %c1_45 = arith.constant 1 : index
    %c0_46 = arith.constant 0 : index
    %c0_47 = arith.constant 0 : index
    %55 = vector.load %arg13[%c1_45, %c0_46, %c0_47] : memref<4x1x128xf32, #tpu.memory_space<vmem>>, vector<1x1x128xf32>
    %56 = vector.shape_cast %55 : vector<1x1x128xf32> to vector<1x128xf32>
    %57 = arith.addf %54, %56 : vector<1x128xf32>
    %58 = arith.negf %57 : vector<1x128xf32>
    %59 = math.exp %58 : vector<1x128xf32>
    %cst_48 = arith.constant 1.000000e+00 : f32
    %60 = vector.broadcast %cst_48 : f32 to vector<1x128xf32>
    %61 = arith.addf %60, %59 : vector<1x128xf32>
    %62 = arith.divf %60, %61 : vector<1x128xf32>
    %c2 = arith.constant 2 : index
    %c0_49 = arith.constant 0 : index
    %c0_50 = arith.constant 0 : index
    %63 = vector.load %arg11[%c2, %c0_49, %c0_50] : memref<3x128x128xf32, #tpu.memory_space<vmem>>, vector<1x128x128xf32>
    %64 = vector.shape_cast %63 : vector<1x128x128xf32> to vector<128x128xf32>
    %cst_51 = arith.constant dense<0.000000e+00> : vector<1x128xf32>
    %65 = tpu.matmul %32, %64, %cst_51 {dimension_numbers = #tpu.dot_dimension_numbers<[1], [0], [0], [1], [0, 0, 1, 1], [], []>} : vector<1x128xf32>, vector<128x128xf32>, vector<1x128xf32> -> vector<1x128xf32>
    %c2_52 = arith.constant 2 : index
    %c0_53 = arith.constant 0 : index
    %c0_54 = arith.constant 0 : index
    %66 = vector.load %arg13[%c2_52, %c0_53, %c0_54] : memref<4x1x128xf32, #tpu.memory_space<vmem>>, vector<1x1x128xf32>
    %67 = vector.shape_cast %66 : vector<1x1x128xf32> to vector<1x128xf32>
    %68 = arith.addf %65, %67 : vector<1x128xf32>
    %c2_55 = arith.constant 2 : index
    %c0_56 = arith.constant 0 : index
    %c0_57 = arith.constant 0 : index
    %69 = vector.load %arg12[%c2_55, %c0_56, %c0_57] : memref<3x128x128xf32, #tpu.memory_space<vmem>>, vector<1x128x128xf32>
    %70 = vector.shape_cast %69 : vector<1x128x128xf32> to vector<128x128xf32>
    %cst_58 = arith.constant dense<0.000000e+00> : vector<1x128xf32>
    %71 = tpu.matmul %5, %70, %cst_58 {dimension_numbers = #tpu.dot_dimension_numbers<[1], [0], [0], [1], [0, 0, 1, 1], [], []>} : vector<1x128xf32>, vector<128x128xf32>, vector<1x128xf32> -> vector<1x128xf32>
    %c3 = arith.constant 3 : index
    %c0_59 = arith.constant 0 : index
    %c0_60 = arith.constant 0 : index
    %72 = vector.load %arg13[%c3, %c0_59, %c0_60] : memref<4x1x128xf32, #tpu.memory_space<vmem>>, vector<1x1x128xf32>
    %73 = vector.shape_cast %72 : vector<1x1x128xf32> to vector<1x128xf32>
    %74 = arith.addf %71, %73 : vector<1x128xf32>
    %75 = arith.mulf %47, %74 : vector<1x128xf32>
    %76 = arith.addf %68, %75 : vector<1x128xf32>
    %77 = math.tanh %76 : vector<1x128xf32>
    %cst_61 = arith.constant 1.000000e+00 : f32
    %78 = vector.broadcast %cst_61 : f32 to vector<1x128xf32>
    %79 = arith.subf %78, %62 : vector<1x128xf32>
    %80 = arith.mulf %79, %77 : vector<1x128xf32>
    %81 = arith.mulf %62, %5 : vector<1x128xf32>
    %82 = arith.addf %80, %81 : vector<1x128xf32>
    %c0_62 = arith.constant 0 : index
    %c0_63 = arith.constant 0 : index
    %83 = vector.load %arg19[%c0_62, %c0_63] : memref<1x128xf32, #tpu.memory_space<vmem>>, vector<1x128xf32>
    tpu.vector_store %arg19[%c0_62, %c0_63], %82 {strides = array<i32>} : memref<1x128xf32, #tpu.memory_space<vmem>>, vector<1x128xf32>,
    %c0_64 = arith.constant 0 : index
    %c0_65 = arith.constant 0 : index
    %84 = vector.load %arg18[%c0_64, %c0_65] : memref<1x128xf32, #tpu.memory_space<vmem>>, vector<1x128xf32>
    tpu.vector_store %arg18[%c0_64, %c0_65], %82 {strides = array<i32>} : memref<1x128xf32, #tpu.memory_space<vmem>>, vector<1x128xf32>,
    %c0_66 = arith.constant 0 : index
    %c0_67 = arith.constant 0 : index
    %85 = vector.load %arg14[%c0_66, %c0_67] : memref<128x128xf32, #tpu.memory_space<vmem>>, vector<128x128xf32>
    %cst_68 = arith.constant dense<0.000000e+00> : vector<1x128xf32>
    %86 = tpu.matmul %82, %85, %cst_68 {dimension_numbers = #tpu.dot_dimension_numbers<[1], [0], [0], [1], [0, 0, 1, 1], [], []>} : vector<1x128xf32>, vector<128x128xf32>, vector<1x128xf32> -> vector<1x128xf32>
    %c0_69 = arith.constant 0 : index
    %c0_70 = arith.constant 0 : index
    %87 = vector.load %arg15[%c0_69, %c0_70] : memref<1x128xf32, #tpu.memory_space<vmem>>, vector<1x128xf32>
    %88 = arith.addf %86, %87 : vector<1x128xf32>
    %cst_71 = arith.constant dense<0xFF800000> : vector<1xf32>
    %89 = vector.multi_reduction <maximumf>, %88, %cst_71 [1] : vector<1x128xf32> to vector<1xf32>
    %90 = vector.shape_cast %89 : vector<1xf32> to vector<1x1xf32>
    %91 = vector.broadcast %90 : vector<1x1xf32> to vector<1x128xf32>
    %92 = arith.subf %88, %91 : vector<1x128xf32>
    %93 = math.exp %92 : vector<1x128xf32>
    %cst_72 = arith.constant dense<0.000000e+00> : vector<1xf32>
    %94 = vector.multi_reduction <add>, %93, %cst_72 [1] : vector<1x128xf32> to vector<1xf32>
    %95 = vector.shape_cast %94 : vector<1xf32> to vector<1x1xf32>
    %96 = math.log %95 : vector<1x1xf32>
    %97 = vector.broadcast %96 : vector<1x1xf32> to vector<1x128xf32>
    %98 = arith.subf %92, %97 : vector<1x128xf32>
    %c0_73 = arith.constant 0 : index
    %c0_74 = arith.constant 0 : index
    %c0_75 = arith.constant 0 : index
    %99 = vector.load %arg16[%c0_73, %c0_74, %c0_75] : memref<1x1x128xf32, #tpu.memory_space<vmem>>, vector<1x1x128xf32>
    %100 = vector.shape_cast %99 : vector<1x1x128xf32> to vector<1x128xf32>
    %101 = vector.shape_cast %98 : vector<1x128xf32> to vector<1x1x128xf32>
    tpu.vector_store %arg16[%c0_73, %c0_74, %c0_75], %101 {strides = array<i32>} : memref<1x1x128xf32, #tpu.memory_space<vmem>>, vector<1x1x128xf32>,
    %c0_76 = arith.constant 0 : index
    %c0_77 = arith.constant 0 : index
    %c0_78 = arith.constant 0 : index
    %102 = vector.load %arg17[%c0_76, %c0_77, %c0_78] : memref<1x1x128xf32, #tpu.memory_space<vmem>>, vector<1x1x128xf32>
    %103 = vector.shape_cast %102 : vector<1x1x128xf32> to vector<1x128xf32>
    %104 = vector.shape_cast %21 : vector<1x128xf32> to vector<1x1x128xf32>
    tpu.vector_store %arg17[%c0_76, %c0_77, %c0_78], %104 {strides = array<i32>} : memref<1x1x128xf32, #tpu.memory_space<vmem>>, vector<1x1x128xf32>,
    return
  }
  func.func @transform_0(%arg0: i32, %arg1: memref<6xi32, #tpu.memory_space<smem>>) -> (i32, i32, i32) {
    %0 = arith.index_cast %arg0 : i32 to index
    %1 = memref.load %arg1[%0] : memref<6xi32, #tpu.memory_space<smem>>
    %c0_i32 = arith.constant 0 : i32
    %c0_i32_0 = arith.constant 0 : i32
    %c0_i32_1 = arith.constant 0 : i32
    return %1, %c0_i32, %c0_i32_0 : i32, i32, i32
  }
  func.func @transform_1(%arg0: i32, %arg1: memref<6xi32, #tpu.memory_space<smem>>) -> (i32, i32) {
    %c0_i32 = arith.constant 0 : i32
    %c0_i32_0 = arith.constant 0 : i32
    %c0_i32_1 = arith.constant 0 : i32
    return %c0_i32, %c0_i32_0 : i32, i32
  }
  func.func @transform_2(%arg0: i32, %arg1: memref<6xi32, #tpu.memory_space<smem>>) -> (i32, i32) {
    %c0_i32 = arith.constant 0 : i32
    %c0_i32_0 = arith.constant 0 : i32
    %c0_i32_1 = arith.constant 0 : i32
    return %c0_i32, %c0_i32_0 : i32, i32
  }
  func.func @transform_3(%arg0: i32, %arg1: memref<6xi32, #tpu.memory_space<smem>>) -> (i32, i32) {
    %c0_i32 = arith.constant 0 : i32
    %c0_i32_0 = arith.constant 0 : i32
    %c0_i32_1 = arith.constant 0 : i32
    return %c0_i32, %c0_i32_0 : i32, i32
  }
  func.func @transform_4(%arg0: i32, %arg1: memref<6xi32, #tpu.memory_space<smem>>) -> (i32, i32) {
    %c0_i32 = arith.constant 0 : i32
    %c0_i32_0 = arith.constant 0 : i32
    %c0_i32_1 = arith.constant 0 : i32
    return %c0_i32, %c0_i32_0 : i32, i32
  }
  func.func @transform_5(%arg0: i32, %arg1: memref<6xi32, #tpu.memory_space<smem>>) -> (i32, i32) {
    %c0_i32 = arith.constant 0 : i32
    %c0_i32_0 = arith.constant 0 : i32
    %c0_i32_1 = arith.constant 0 : i32
    return %c0_i32, %c0_i32_0 : i32, i32
  }
  func.func @transform_6(%arg0: i32, %arg1: memref<6xi32, #tpu.memory_space<smem>>) -> (i32, i32) {
    %c0_i32 = arith.constant 0 : i32
    %c0_i32_0 = arith.constant 0 : i32
    %c0_i32_1 = arith.constant 0 : i32
    return %c0_i32, %c0_i32_0 : i32, i32
  }
  func.func @transform_7(%arg0: i32, %arg1: memref<6xi32, #tpu.memory_space<smem>>) -> (i32, i32) {
    %c0_i32 = arith.constant 0 : i32
    %c0_i32_0 = arith.constant 0 : i32
    %c0_i32_1 = arith.constant 0 : i32
    return %c0_i32, %c0_i32_0 : i32, i32
  }
  func.func @transform_8(%arg0: i32, %arg1: memref<6xi32, #tpu.memory_space<smem>>) -> (i32, i32) {
    %c0_i32 = arith.constant 0 : i32
    %c0_i32_0 = arith.constant 0 : i32
    %c0_i32_1 = arith.constant 0 : i32
    return %c0_i32, %c0_i32_0 : i32, i32
  }
  func.func @transform_9(%arg0: i32, %arg1: memref<6xi32, #tpu.memory_space<smem>>) -> (i32, i32, i32) {
    %c0_i32 = arith.constant 0 : i32
    %c0_i32_0 = arith.constant 0 : i32
    %c0_i32_1 = arith.constant 0 : i32
    %c0_i32_2 = arith.constant 0 : i32
    return %c0_i32, %c0_i32_0, %c0_i32_1 : i32, i32, i32
  }
  func.func @transform_10(%arg0: i32, %arg1: memref<6xi32, #tpu.memory_space<smem>>) -> (i32, i32, i32) {
    %c0_i32 = arith.constant 0 : i32
    %c0_i32_0 = arith.constant 0 : i32
    %c0_i32_1 = arith.constant 0 : i32
    %c0_i32_2 = arith.constant 0 : i32
    return %c0_i32, %c0_i32_0, %c0_i32_1 : i32, i32, i32
  }
  func.func @transform_11(%arg0: i32, %arg1: memref<6xi32, #tpu.memory_space<smem>>) -> (i32, i32, i32) {
    %c0_i32 = arith.constant 0 : i32
    %c0_i32_0 = arith.constant 0 : i32
    %c0_i32_1 = arith.constant 0 : i32
    %c0_i32_2 = arith.constant 0 : i32
    return %c0_i32, %c0_i32_0, %c0_i32_1 : i32, i32, i32
  }
  func.func @transform_12(%arg0: i32, %arg1: memref<6xi32, #tpu.memory_space<smem>>) -> (i32, i32) {
    %c0_i32 = arith.constant 0 : i32
    %c0_i32_0 = arith.constant 0 : i32
    %c0_i32_1 = arith.constant 0 : i32
    return %c0_i32, %c0_i32_0 : i32, i32
  }
  func.func @transform_13(%arg0: i32, %arg1: memref<6xi32, #tpu.memory_space<smem>>) -> (i32, i32) {
    %c0_i32 = arith.constant 0 : i32
    %c0_i32_0 = arith.constant 0 : i32
    %c0_i32_1 = arith.constant 0 : i32
    return %c0_i32, %c0_i32_0 : i32, i32
  }
  func.func @transform_14(%arg0: i32, %arg1: memref<6xi32, #tpu.memory_space<smem>>) -> (i32, i32, i32) {
    %c0_i32 = arith.constant 0 : i32
    %c0_i32_0 = arith.constant 0 : i32
    %c0_i32_1 = arith.constant 0 : i32
    return %arg0, %c0_i32, %c0_i32_0 : i32, i32, i32
  }
  func.func @transform_15(%arg0: i32, %arg1: memref<6xi32, #tpu.memory_space<smem>>) -> (i32, i32, i32) {
    %c0_i32 = arith.constant 0 : i32
    %c0_i32_0 = arith.constant 0 : i32
    %c0_i32_1 = arith.constant 0 : i32
    return %arg0, %c0_i32, %c0_i32_0 : i32, i32, i32
  }
  func.func @transform_16(%arg0: i32, %arg1: memref<6xi32, #tpu.memory_space<smem>>) -> (i32, i32) {
    %c0_i32 = arith.constant 0 : i32
    %c0_i32_0 = arith.constant 0 : i32
    %c0_i32_1 = arith.constant 0 : i32
    return %c0_i32, %c0_i32_0 : i32, i32
  }
}

</mosaic_0001>

<llo_original>
// kernel: tpu_custom_call.1
$region0: #{tpu_custom_call.1}
  #allocation0 [shape = 'u32[]', space=smem, size = 0x4, offset = 0x4, fixed_abs, tag = 'smem constant byte address 0x4 - core index']
  #allocation1 [shape = 'u32[144,128]{1,0:T(1,128)}', space=vmem, size = 0x12000, scoped, tag = 'internal scratch']
  #allocation2 [shape = 'f32[1,128]{1,0:T(1,128)}', space=vmem, size = 0x200, scoped, tag = 'scratch operand']
  #allocation3 [shape = 's32[1]{0}', space=sflag, size = 0x4, scoped, tag = 'scoped memory for tpu_custom_call.1']
  #allocation4 [shape = 'u8[512]{0}', space=smem, size = 0x200, scoped, tag = 'prefetched SMEM operand 0']
  %s0 = inlined_call_operand.hbm [shape: s32[6], index: 0, kind: input, shape index: {}]
  %s1 = inlined_call_operand.hbm [shape: f32[24,1,128], index: 1, kind: input, shape index: {}]
  %s2 = inlined_call_operand.vmem [shape: f32[1,128], index: 2, kind: input, shape index: {}]
  %s3 = inlined_call_operand.hbm [shape: f32[128,128], index: 3, kind: input, shape index: {}]
  %s4 = inlined_call_operand.hbm [shape: f32[128,128], index: 4, kind: input, shape index: {}]
  %s5 = inlined_call_operand.hbm [shape: f32[128,128], index: 5, kind: input, shape index: {}]
  %s6 = inlined_call_operand.vmem [shape: f32[1,128], index: 6, kind: input, shape index: {}]
  %s7 = inlined_call_operand.hbm [shape: f32[128,128], index: 7, kind: input, shape index: {}]
  %s8 = inlined_call_operand.hbm [shape: f32[128,128], index: 8, kind: input, shape index: {}]
  %s9 = inlined_call_operand.vmem [shape: f32[1,128], index: 9, kind: input, shape index: {}]
  %s10 = inlined_call_operand.hbm [shape: f32[3,128,128], index: 10, kind: input, shape index: {}]
  %s11 = inlined_call_operand.hbm [shape: f32[3,128,128], index: 11, kind: input, shape index: {}]
  %s12 = inlined_call_operand.vmem [shape: f32[4,1,128], index: 12, kind: input, shape index: {}]
  %s13 = inlined_call_operand.hbm [shape: f32[128,128], index: 13, kind: input, shape index: {}]
  %s14 = inlined_call_operand.vmem [shape: f32[1,128], index: 14, kind: input, shape index: {}]
  %s15 = inlined_call_operand.hbm [shape: f32[6,1,128], index: 15, kind: output, shape index: {0}]
  %s16 = inlined_call_operand.hbm [shape: f32[6,1,128], index: 16, kind: output, shape index: {1}]
  %s17 = inlined_call_operand.hbm [shape: f32[1,128], index: 17, kind: output, shape index: {2}]
  %18 = xla_tuple %s15, %s16, %s17
  %s19 = sld [smem:[#allocation0]]
  $region145: #{tpu_custom_call.1} parent=0
    _
  %s21 = ssub.s32 1, %s19
  %s22 = scalar_select 0, %s21, %s19
  %24 = dma.hbm_to_smem %s0, 16, [#allocation4], [#allocation3]
  %25 = dma.done [#allocation3], 16
  %26 = sfence
  $region1: #{tpu_custom_call.1} parent=0
    #allocation5 [shape = 'u8[1024]{0}', space=vmem, size = 0x400, scoped, tag = 'input window, operand 1']
    #allocation6 [shape = 's32[2]{0}', space=sflag, size = 0x8, scoped, tag = 'scoped memory for tpu_custom_call.1']
    #allocation7 [shape = 's32[2]{0}', space=sflag, size = 0x8, scoped, tag = 'scoped memory for tpu_custom_call.1']
    #allocation8 [shape = 'u8[65536]{0}', space=vmem, size = 0x10000, scoped, tag = 'input window, operand 3, single buffered']
    #allocation9 [shape = 's32[1]{0}', space=sflag, size = 0x4, scoped, tag = 'scoped memory for tpu_custom_call.1']
    #allocation10 [shape = 'u8[65536]{0}', space=vmem, size = 0x10000, scoped, tag = 'input window, operand 4, single buffered']
    #allocation11 [shape = 'u8[65536]{0}', space=vmem, size = 0x10000, scoped, tag = 'input window, operand 5, single buffered']
    #allocation12 [shape = 's32[1]{0}', space=sflag, size = 0x4, scoped, tag = 'scoped memory for tpu_custom_call.1']
    #allocation13 [shape = 'u8[65536]{0}', space=vmem, size = 0x10000, scoped, tag = 'input window, operand 7, single buffered']
    #allocation14 [shape = 'u8[65536]{0}', space=vmem, size = 0x10000, scoped, tag = 'input window, operand 8, single buffered']
    #allocation15 [shape = 's32[1]{0}', space=sflag, size = 0x4, scoped, tag = 'scoped memory for tpu_custom_call.1']
    #allocation16 [shape = 'u8[196608]{0}', space=vmem, size = 0x30000, scoped, tag = 'input window, operand 10, single buffered']
    #allocation17 [shape = 'u8[196608]{0}', space=vmem, size = 0x30000, scoped, tag = 'input window, operand 11, single buffered']
    #allocation18 [shape = 's32[1]{0}', space=sflag, size = 0x4, scoped, tag = 'scoped memory for tpu_custom_call.1']
    #allocation19 [shape = 'u8[65536]{0}', space=vmem, size = 0x10000, scoped, tag = 'input window, operand 13, single buffered']
    #allocation20 [shape = 'u8[1024]{0}', space=vmem, size = 0x400, scoped, tag = 'output window, operand 0']
    #allocation21 [shape = 'u8[1024]{0}', space=vmem, size = 0x400, scoped, tag = 'output window, operand 1']
    #allocation22 [shape = 's32[2]{0}', space=sflag, size = 0x8, scoped, tag = 'scoped memory for tpu_custom_call.1']
    #allocation23 [shape = 'u8[512]{0}', space=vmem, size = 0x400, scoped, tag = 'output window, operand 2, single buffered']
    %27 = vsyncpa [#allocation6], 0
    %s28 = scalar_lea.sflag [#allocation6], 1
    %29 = vsyncpa %s28, 0
    %30 = vsyncpa [#allocation9], 0
    %31 = vsyncpa [#allocation12], 0
    %32 = vsyncpa [#allocation15], 0
    %33 = vsyncpa [#allocation18], 0
    %34 = vsyncpa [#allocation7], 0
    %s35 = scalar_lea.sflag [#allocation7], 1
    %36 = vsyncpa %s35, 0
    %37 = vsyncpa [#allocation22], 0
    %s38 = scalar_lea.sflag [#allocation22], 1
    %39 = vsyncpa %s38, 0
    loop: start=0, step=1, limit=8
    $region2: #{tpu_custom_call.1} parent=1 // loop_pre_header
      _
    $region3: #{tpu_custom_call.1} parent=1 // loop_header
      %s41 = sphi 0, %s45
      %p42 = scmp.ge.s32.totalorder %s41, 8
      %s53 = sphi 0, %s55
      %s56 = sphi 0, %s53
      %s57 = sphi 0, %s56
      %s73 = sphi 0, %s57
      %s77 = sphi 0, %s77
      %s79 = sphi 0, %s77
      %s80 = sphi 0, %s79
      %s94 = sphi 0, %s80
      %s98 = sphi 0, %s98
      %s100 = sphi 0, %s98
      %s101 = sphi 0, %s100
      %s115 = sphi 0, %s101
      %s119 = sphi 0, %s119
      %s121 = sphi 0, %s119
      %s122 = sphi 0, %s121
      %s136 = sphi 0, %s122
      %s140 = sphi 0, %s140
      %s142 = sphi 0, %s140
      %s143 = sphi 0, %s142
      %s157 = sphi 0, %s143
      %s161 = sphi 0, %s161
      %s163 = sphi 0, %s161
      %s164 = sphi 0, %s163
      %s178 = sphi 0, %s164
      %s182 = sphi 0, %s182
      %s184 = sphi 0, %s182
      %s185 = sphi 0, %s184
      %s199 = sphi 0, %s185
      %s203 = sphi 0, %s203
      %s205 = sphi 0, %s203
      %s206 = sphi 0, %s205
      %s220 = sphi 0, %s206
      %s224 = sphi 0, %s224
      %s226 = sphi 0, %s224
      %s227 = sphi 0, %s226
      %s241 = sphi 0, %s227
      %s245 = sphi 0, %s245
      %s247 = sphi 0, %s245
      %s248 = sphi 0, %s247
      %s262 = sphi 0, %s248
      %s266 = sphi 0, %s266
      %s268 = sphi 0, %s266
      %s269 = sphi 0, %s268
      %s283 = sphi 0, %s269
      %s287 = sphi 0, %s287
      %s289 = sphi 0, %s287
      %s290 = sphi 0, %s289
      %s304 = sphi 0, %s290
      %s308 = sphi 0, %s308
      %s310 = sphi 0, %s308
      %s311 = sphi 0, %s310
      %s325 = sphi 0, %s311
      %s329 = sphi 0, %s329
      %s331 = sphi 0, %s329
      %s332 = sphi 0, %s331
      %s346 = sphi 0, %s332
      %s352 = sphi 0, %s354
      %s355 = sphi 0, %s352
      %s356 = sphi 0, %s355
      %s372 = sphi 0, %s356
      %s378 = sphi 0, %s380
      %s381 = sphi 0, %s378
      %s382 = sphi 0, %s381
      %s398 = sphi 0, %s382
      %s402 = sphi 0, %s402
      %s404 = sphi 0, %s402
      %s405 = sphi 0, %s404
      %s419 = sphi 0, %s405
    $region4: #{tpu_custom_call.1} parent=1 // loop_header_branch
      %44 = sbr.rel (%p42) target = $region8
    $region5: #{tpu_custom_call.1} parent=1 // loop_body
      %s46 = ssub.s32 %s41, 1
      %s47 = ssub.s32 %s41, 2
      %s48 = sadd.s32 %s41, 1
      %s49 = sld [smem:[#allocation4 + %s41]]
      %s50 = sld [smem:[#allocation4 + %s48]]
      %s51 = ssub.s32 %s49, %s50
      %p52 = scmp.eq.s32.totalorder %s51, 0
      %s54 = sadd.s32 %s53, 1
      %s55 = scalar_select %p52, %s53, %s54
      %p58 = pneg %p52
      %p59 = scmp.eq.s32.totalorder %s41, 5
      %p60 = por %p58, %p59
      %p61 = scmp.ne.s32.totalorder %s53, %s56
      %p62 = scmp.eq.s32.totalorder %s41, 0
      %p63 = por %p61, %p62
      %p64 = scmp.ne.s32.totalorder %s53, %s56
      %p65 = scmp.eq.s32.totalorder %s46, 5
      %p66 = por %p64, %p65
      %p67 = scmp.ne.s32.totalorder %s56, %s57
      %p68 = scmp.eq.s32.totalorder %s46, 0
      %p69 = por %p67, %p68
      %p70 = scmp.ne.s32.totalorder %s56, %s57
      %p71 = scmp.eq.s32.totalorder %s47, 5
      %p72 = por %p70, %p71
      %p74 = scmp.ne.s32.totalorder %s57, %s73
      %p75 = scmp.eq.s32.totalorder %s47, 0
      %p76 = por %p74, %p75
      %s78 = sadd.s32 %s77, 1
      %p81 = scmp.eq.s32.totalorder %s41, 5
      %p82 = scmp.ne.s32.totalorder %s77, %s79
      %p83 = scmp.eq.s32.totalorder %s41, 0
      %p84 = por %p82, %p83
      %p85 = scmp.ne.s32.totalorder %s77, %s79
      %p86 = scmp.eq.s32.totalorder %s46, 5
      %p87 = por %p85, %p86
      %p88 = scmp.ne.s32.totalorder %s79, %s80
      %p89 = scmp.eq.s32.totalorder %s46, 0
      %p90 = por %p88, %p89
      %p91 = scmp.ne.s32.totalorder %s79, %s80
      %p92 = scmp.eq.s32.totalorder %s47, 5
      %p93 = por %p91, %p92
      %p95 = scmp.ne.s32.totalorder %s80, %s94
      %p96 = scmp.eq.s32.totalorder %s47, 0
      %p97 = por %p95, %p96
      %s99 = sadd.s32 %s98, 1
      %p102 = scmp.eq.s32.totalorder %s41, 5
      %p103 = scmp.ne.s32.totalorder %s98, %s100
      %p104 = scmp.eq.s32.totalorder %s41, 0
      %p105 = por %p103, %p104
      %p106 = scmp.ne.s32.totalorder %s98, %s100
      %p107 = scmp.eq.s32.totalorder %s46, 5
      %p108 = por %p106, %p107
      %p109 = scmp.ne.s32.totalorder %s100, %s101
      %p110 = scmp.eq.s32.totalorder %s46, 0
      %p111 = por %p109, %p110
      %p112 = scmp.ne.s32.totalorder %s100, %s101
      %p113 = scmp.eq.s32.totalorder %s47, 5
      %p114 = por %p112, %p113
      %p116 = scmp.ne.s32.totalorder %s101, %s115
      %p117 = scmp.eq.s32.totalorder %s47, 0
      %p118 = por %p116, %p117
      %s120 = sadd.s32 %s119, 1
      %p123 = scmp.eq.s32.totalorder %s41, 5
      %p124 = scmp.ne.s32.totalorder %s119, %s121
      %p125 = scmp.eq.s32.totalorder %s41, 0
      %p126 = por %p124, %p125
      %p127 = scmp.ne.s32.totalorder %s119, %s121
      %p128 = scmp.eq.s32.totalorder %s46, 5
      %p129 = por %p127, %p128
      %p130 = scmp.ne.s32.totalorder %s121, %s122
      %p131 = scmp.eq.s32.totalorder %s46, 0
      %p132 = por %p130, %p131
      %p133 = scmp.ne.s32.totalorder %s121, %s122
      %p134 = scmp.eq.s32.totalorder %s47, 5
      %p135 = por %p133, %p134
      %p137 = scmp.ne.s32.totalorder %s122, %s136
      %p138 = scmp.eq.s32.totalorder %s47, 0
      %p139 = por %p137, %p138
      %s141 = sadd.s32 %s140, 1
      %p144 = scmp.eq.s32.totalorder %s41, 5
      %p145 = scmp.ne.s32.totalorder %s140, %s142
      %p146 = scmp.eq.s32.totalorder %s41, 0
      %p147 = por %p145, %p146
      %p148 = scmp.ne.s32.totalorder %s140, %s142
      %p149 = scmp.eq.s32.totalorder %s46, 5
      %p150 = por %p148, %p149
      %p151 = scmp.ne.s32.totalorder %s142, %s143
      %p152 = scmp.eq.s32.totalorder %s46, 0
      %p153 = por %p151, %p152
      %p154 = scmp.ne.s32.totalorder %s142, %s143
      %p155 = scmp.eq.s32.totalorder %s47, 5
      %p156 = por %p154, %p155
      %p158 = scmp.ne.s32.totalorder %s143, %s157
      %p159 = scmp.eq.s32.totalorder %s47, 0
      %p160 = por %p158, %p159
      %s162 = sadd.s32 %s161, 1
      %p165 = scmp.eq.s32.totalorder %s41, 5
      %p166 = scmp.ne.s32.totalorder %s161, %s163
      %p167 = scmp.eq.s32.totalorder %s41, 0
      %p168 = por %p166, %p167
      %p169 = scmp.ne.s32.totalorder %s161, %s163
      %p170 = scmp.eq.s32.totalorder %s46, 5
      %p171 = por %p169, %p170
      %p172 = scmp.ne.s32.totalorder %s163, %s164
      %p173 = scmp.eq.s32.totalorder %s46, 0
      %p174 = por %p172, %p173
      %p175 = scmp.ne.s32.totalorder %s163, %s164
      %p176 = scmp.eq.s32.totalorder %s47, 5
      %p177 = por %p175, %p176
      %p179 = scmp.ne.s32.totalorder %s164, %s178
      %p180 = scmp.eq.s32.totalorder %s47, 0
      %p181 = por %p179, %p180
      %s183 = sadd.s32 %s182, 1
      %p186 = scmp.eq.s32.totalorder %s41, 5
      %p187 = scmp.ne.s32.totalorder %s182, %s184
      %p188 = scmp.eq.s32.totalorder %s41, 0
      %p189 = por %p187, %p188
      %p190 = scmp.ne.s32.totalorder %s182, %s184
      %p191 = scmp.eq.s32.totalorder %s46, 5
      %p192 = por %p190, %p191
      %p193 = scmp.ne.s32.totalorder %s184, %s185
      %p194 = scmp.eq.s32.totalorder %s46, 0
      %p195 = por %p193, %p194
      %p196 = scmp.ne.s32.totalorder %s184, %s185
      %p197 = scmp.eq.s32.totalorder %s47, 5
      %p198 = por %p196, %p197
      %p200 = scmp.ne.s32.totalorder %s185, %s199
      %p201 = scmp.eq.s32.totalorder %s47, 0
      %p202 = por %p200, %p201
      %s204 = sadd.s32 %s203, 1
      %p207 = scmp.eq.s32.totalorder %s41, 5
      %p208 = scmp.ne.s32.totalorder %s203, %s205
      %p209 = scmp.eq.s32.totalorder %s41, 0
      %p210 = por %p208, %p209
      %p211 = scmp.ne.s32.totalorder %s203, %s205
      %p212 = scmp.eq.s32.totalorder %s46, 5
      %p213 = por %p211, %p212
      %p214 = scmp.ne.s32.totalorder %s205, %s206
      %p215 = scmp.eq.s32.totalorder %s46, 0
      %p216 = por %p214, %p215
      %p217 = scmp.ne.s32.totalorder %s205, %s206
      %p218 = scmp.eq.s32.totalorder %s47, 5
      %p219 = por %p217, %p218
      %p221 = scmp.ne.s32.totalorder %s206, %s220
      %p222 = scmp.eq.s32.totalorder %s47, 0
      %p223 = por %p221, %p222
      %s225 = sadd.s32 %s224, 1
      %p228 = scmp.eq.s32.totalorder %s41, 5
      %p229 = scmp.ne.s32.totalorder %s224, %s226
      %p230 = scmp.eq.s32.totalorder %s41, 0
      %p231 = por %p229, %p230
      %p232 = scmp.ne.s32.totalorder %s224, %s226
      %p233 = scmp.eq.s32.totalorder %s46, 5
      %p234 = por %p232, %p233
      %p235 = scmp.ne.s32.totalorder %s226, %s227
      %p236 = scmp.eq.s32.totalorder %s46, 0
      %p237 = por %p235, %p236
      %p238 = scmp.ne.s32.totalorder %s226, %s227
      %p239 = scmp.eq.s32.totalorder %s47, 5
      %p240 = por %p238, %p239
      %p242 = scmp.ne.s32.totalorder %s227, %s241
      %p243 = scmp.eq.s32.totalorder %s47, 0
      %p244 = por %p242, %p243
      %s246 = sadd.s32 %s245, 1
      %p249 = scmp.eq.s32.totalorder %s41, 5
      %p250 = scmp.ne.s32.totalorder %s245, %s247
      %p251 = scmp.eq.s32.totalorder %s41, 0
      %p252 = por %p250, %p251
      %p253 = scmp.ne.s32.totalorder %s245, %s247
      %p254 = scmp.eq.s32.totalorder %s46, 5
      %p255 = por %p253, %p254
      %p256 = scmp.ne.s32.totalorder %s247, %s248
      %p257 = scmp.eq.s32.totalorder %s46, 0
      %p258 = por %p256, %p257
      %p259 = scmp.ne.s32.totalorder %s247, %s248
      %p260 = scmp.eq.s32.totalorder %s47, 5
      %p261 = por %p259, %p260
      %p263 = scmp.ne.s32.totalorder %s248, %s262
      %p264 = scmp.eq.s32.totalorder %s47, 0
      %p265 = por %p263, %p264
      %s267 = sadd.s32 %s266, 1
      %p270 = scmp.eq.s32.totalorder %s41, 5
      %p271 = scmp.ne.s32.totalorder %s266, %s268
      %p272 = scmp.eq.s32.totalorder %s41, 0
      %p273 = por %p271, %p272
      %p274 = scmp.ne.s32.totalorder %s266, %s268
      %p275 = scmp.eq.s32.totalorder %s46, 5
      %p276 = por %p274, %p275
      %p277 = scmp.ne.s32.totalorder %s268, %s269
      %p278 = scmp.eq.s32.totalorder %s46, 0
      %p279 = por %p277, %p278
      %p280 = scmp.ne.s32.totalorder %s268, %s269
      %p281 = scmp.eq.s32.totalorder %s47, 5
      %p282 = por %p280, %p281
      %p284 = scmp.ne.s32.totalorder %s269, %s283
      %p285 = scmp.eq.s32.totalorder %s47, 0
      %p286 = por %p284, %p285
      %s288 = sadd.s32 %s287, 1
      %p291 = scmp.eq.s32.totalorder %s41, 5
      %p292 = scmp.ne.s32.totalorder %s287, %s289
      %p293 = scmp.eq.s32.totalorder %s41, 0
      %p294 = por %p292, %p293
      %p295 = scmp.ne.s32.totalorder %s287, %s289
      %p296 = scmp.eq.s32.totalorder %s46, 5
      %p297 = por %p295, %p296
      %p298 = scmp.ne.s32.totalorder %s289, %s290
      %p299 = scmp.eq.s32.totalorder %s46, 0
      %p300 = por %p298, %p299
      %p301 = scmp.ne.s32.totalorder %s289, %s290
      %p302 = scmp.eq.s32.totalorder %s47, 5
      %p303 = por %p301, %p302
      %p305 = scmp.ne.s32.totalorder %s290, %s304
      %p306 = scmp.eq.s32.totalorder %s47, 0
      %p307 = por %p305, %p306
      %s309 = sadd.s32 %s308, 1
      %p312 = scmp.eq.s32.totalorder %s41, 5
      %p313 = scmp.ne.s32.totalorder %s308, %s310
      %p314 = scmp.eq.s32.totalorder %s41, 0
      %p315 = por %p313, %p314
      %p316 = scmp.ne.s32.totalorder %s308, %s310
      %p317 = scmp.eq.s32.totalorder %s46, 5
      %p318 = por %p316, %p317
      %p319 = scmp.ne.s32.totalorder %s310, %s311
      %p320 = scmp.eq.s32.totalorder %s46, 0
      %p321 = por %p319, %p320
      %p322 = scmp.ne.s32.totalorder %s310, %s311
      %p323 = scmp.eq.s32.totalorder %s47, 5
      %p324 = por %p322, %p323
      %p326 = scmp.ne.s32.totalorder %s311, %s325
      %p327 = scmp.eq.s32.totalorder %s47, 0
      %p328 = por %p326, %p327
      %s330 = sadd.s32 %s329, 1
      %p333 = scmp.eq.s32.totalorder %s41, 5
      %p334 = scmp.ne.s32.totalorder %s329, %s331
      %p335 = scmp.eq.s32.totalorder %s41, 0
      %p336 = por %p334, %p335
      %p337 = scmp.ne.s32.totalorder %s329, %s331
      %p338 = scmp.eq.s32.totalorder %s46, 5
      %p339 = por %p337, %p338
      %p340 = scmp.ne.s32.totalorder %s331, %s332
      %p341 = scmp.eq.s32.totalorder %s46, 0
      %p342 = por %p340, %p341
      %p343 = scmp.ne.s32.totalorder %s331, %s332
      %p344 = scmp.eq.s32.totalorder %s47, 5
      %p345 = por %p343, %p344
      %p347 = scmp.ne.s32.totalorder %s332, %s346
      %p348 = scmp.eq.s32.totalorder %s47, 0
      %p349 = por %p347, %p348
      %s350 = ssub.s32 %s41, %s48
      %p351 = scmp.eq.s32.totalorder %s350, 0
      %s353 = sadd.s32 %s352, 1
      %s354 = scalar_select %p351, %s352, %s353
      %p357 = pneg %p351
      %p358 = scmp.eq.s32.totalorder %s41, 5
      %p359 = por %p357, %p358
      %p360 = scmp.ne.s32.totalorder %s352, %s355
      %p361 = scmp.eq.s32.totalorder %s41, 0
      %p362 = por %p360, %p361
      %p363 = scmp.ne.s32.totalorder %s352, %s355
      %p364 = scmp.eq.s32.totalorder %s46, 5
      %p365 = por %p363, %p364
      %p366 = scmp.ne.s32.totalorder %s355, %s356
      %p367 = scmp.eq.s32.totalorder %s46, 0
      %p368 = por %p366, %p367
      %p369 = scmp.ne.s32.totalorder %s355, %s356
      %p370 = scmp.eq.s32.totalorder %s47, 5
      %p371 = por %p369, %p370
      %p373 = scmp.ne.s32.totalorder %s356, %s372
      %p374 = scmp.eq.s32.totalorder %s47, 0
      %p375 = por %p373, %p374
      %s376 = ssub.s32 %s41, %s48
      %p377 = scmp.eq.s32.totalorder %s376, 0
      %s379 = sadd.s32 %s378, 1
      %s380 = scalar_select %p377, %s378, %s379
      %p383 = pneg %p377
      %p384 = scmp.eq.s32.totalorder %s41, 5
      %p385 = por %p383, %p384
      %p386 = scmp.ne.s32.totalorder %s378, %s381
      %p387 = scmp.eq.s32.totalorder %s41, 0
      %p388 = por %p386, %p387
      %p389 = scmp.ne.s32.totalorder %s378, %s381
      %p390 = scmp.eq.s32.totalorder %s46, 5
      %p391 = por %p389, %p390
      %p392 = scmp.ne.s32.totalorder %s381, %s382
      %p393 = scmp.eq.s32.totalorder %s46, 0
      %p394 = por %p392, %p393
      %p395 = scmp.ne.s32.totalorder %s381, %s382
      %p396 = scmp.eq.s32.totalorder %s47, 5
      %p397 = por %p395, %p396
      %p399 = scmp.ne.s32.totalorder %s382, %s398
      %p400 = scmp.eq.s32.totalorder %s47, 0
      %p401 = por %p399, %p400
      %s403 = sadd.s32 %s402, 1
      %p406 = scmp.eq.s32.totalorder %s41, 5
      %p407 = scmp.ne.s32.totalorder %s402, %s404
      %p408 = scmp.eq.s32.totalorder %s41, 0
      %p409 = por %p407, %p408
      %p410 = scmp.ne.s32.totalorder %s402, %s404
      %p411 = scmp.eq.s32.totalorder %s46, 5
      %p412 = por %p410, %p411
      %p413 = scmp.ne.s32.totalorder %s404, %s405
      %p414 = scmp.eq.s32.totalorder %s46, 0
      %p415 = por %p413, %p414
      %p416 = scmp.ne.s32.totalorder %s404, %s405
      %p417 = scmp.eq.s32.totalorder %s47, 5
      %p418 = por %p416, %p417
      %p420 = scmp.ne.s32.totalorder %s405, %s419
      %p421 = scmp.eq.s32.totalorder %s47, 0
      %p422 = por %p420, %p421
      %p423 = scmp.le.s32.totalorder 1, %s41
      %p424 = scmp.lt.s32.totalorder %s41, 7
      %p425 = pnand %p423, %p424
      %p426 = pneg %p425
      // Predicated region
      $region9: #{tpu_custom_call.1} parent=5 // pred_check
        _
      $region10: #{tpu_custom_call.1} parent=5 // pred_check_branch
        %428 = sbr.rel (%p425) target = $region12
      $region11: #{tpu_custom_call.1} parent=5 // pred_region
        %s429 = ssub.s32 %s41, 1
        // Predicated region
        $region13: #{tpu_custom_call.1} parent=11 // pred_check
          %p430 = pneg %p90
        $region14: #{tpu_custom_call.1} parent=11 // pred_check_branch
          %432 = sbr.rel (%p430) target = $region16
        $region15: #{tpu_custom_call.1} parent=11 // pred_region
          _
        $region16: #{tpu_custom_call.1} parent=11 // pred_fallthru
          _
        // Predicated region
        $region17: #{tpu_custom_call.1} parent=11 // pred_check
          %p433 = pneg %p111
        $region18: #{tpu_custom_call.1} parent=11 // pred_check_branch
          %435 = sbr.rel (%p433) target = $region20
        $region19: #{tpu_custom_call.1} parent=11 // pred_region
          %s437 = ssub.s32 2048, 2048
          %438 = vsyncadd [#allocation9], %s437
          %s439 = sshll.u32 [#allocation8], 4
          %s440 = int_to_ptr.vmem [resolvable:$true] %s439
          %445 = dma.hbm_to_vmem [thread:$0]  %s3, 2048, %s440, [#allocation9], 128, 128, 8
        $region20: #{tpu_custom_call.1} parent=11 // pred_fallthru
          _
        // Predicated region
        $region21: #{tpu_custom_call.1} parent=11 // pred_check
          %p446 = pneg %p132
        $region22: #{tpu_custom_call.1} parent=11 // pred_check_branch
          %448 = sbr.rel (%p446) target = $region24
        $region23: #{tpu_custom_call.1} parent=11 // pred_region
          %s450 = ssub.s32 2048, 2048
          %451 = vsyncadd [#allocation9], %s450
          %s452 = sshll.u32 [#allocation10], 4
          %s453 = int_to_ptr.vmem [resolvable:$true] %s452
          %458 = dma.hbm_to_vmem [thread:$0]  %s4, 2048, %s453, [#allocation9], 128, 128, 8
        $region24: #{tpu_custom_call.1} parent=11 // pred_fallthru
          _
        // Predicated region
        $region25: #{tpu_custom_call.1} parent=11 // pred_check
          %p459 = pneg %p153
        $region26: #{tpu_custom_call.1} parent=11 // pred_check_branch
          %461 = sbr.rel (%p459) target = $region28
        $region27: #{tpu_custom_call.1} parent=11 // pred_region
          %s463 = ssub.s32 2048, 2048
          %464 = vsyncadd [#allocation12], %s463
          %s465 = sshll.u32 [#allocation11], 4
          %s466 = int_to_ptr.vmem [resolvable:$true] %s465
          %471 = dma.hbm_to_vmem [thread:$0]  %s5, 2048, %s466, [#allocation12], 128, 128, 8
        $region28: #{tpu_custom_call.1} parent=11 // pred_fallthru
          _
        // Predicated region
        $region29: #{tpu_custom_call.1} parent=11 // pred_check
          %p472 = pneg %p174
        $region30: #{tpu_custom_call.1} parent=11 // pred_check_branch
          %474 = sbr.rel (%p472) target = $region32
        $region31: #{tpu_custom_call.1} parent=11 // pred_region
          _
        $region32: #{tpu_custom_call.1} parent=11 // pred_fallthru
          _
        // Predicated region
        $region33: #{tpu_custom_call.1} parent=11 // pred_check
          %p475 = pneg %p195
        $region34: #{tpu_custom_call.1} parent=11 // pred_check_branch
          %477 = sbr.rel (%p475) target = $region36
        $region35: #{tpu_custom_call.1} parent=11 // pred_region
          %s479 = ssub.s32 2048, 2048
          %480 = vsyncadd [#allocation12], %s479
          %s481 = sshll.u32 [#allocation13], 4
          %s482 = int_to_ptr.vmem [resolvable:$true] %s481
          %487 = dma.hbm_to_vmem [thread:$0]  %s7, 2048, %s482, [#allocation12], 128, 128, 8
        $region36: #{tpu_custom_call.1} parent=11 // pred_fallthru
          _
        // Predicated region
        $region37: #{tpu_custom_call.1} parent=11 // pred_check
          %p488 = pneg %p216
        $region38: #{tpu_custom_call.1} parent=11 // pred_check_branch
          %490 = sbr.rel (%p488) target = $region40
        $region39: #{tpu_custom_call.1} parent=11 // pred_region
          %s492 = ssub.s32 2048, 2048
          %493 = vsyncadd [#allocation15], %s492
          %s494 = sshll.u32 [#allocation14], 4
          %s495 = int_to_ptr.vmem [resolvable:$true] %s494
          %500 = dma.hbm_to_vmem [thread:$0]  %s8, 2048, %s495, [#allocation15], 128, 128, 8
        $region40: #{tpu_custom_call.1} parent=11 // pred_fallthru
          _
        // Predicated region
        $region41: #{tpu_custom_call.1} parent=11 // pred_check
          %p501 = pneg %p237
        $region42: #{tpu_custom_call.1} parent=11 // pred_check_branch
          %503 = sbr.rel (%p501) target = $region44
        $region43: #{tpu_custom_call.1} parent=11 // pred_region
          _
        $region44: #{tpu_custom_call.1} parent=11 // pred_fallthru
          _
        // Predicated region
        $region45: #{tpu_custom_call.1} parent=11 // pred_check
          %p504 = pneg %p258
        $region46: #{tpu_custom_call.1} parent=11 // pred_check_branch
          %506 = sbr.rel (%p504) target = $region48
        $region47: #{tpu_custom_call.1} parent=11 // pred_region
          %s508 = ssub.s32 6144, 6144
          %509 = vsyncadd [#allocation15], %s508
          %s510 = sshll.u32 [#allocation16], 4
          %s511 = int_to_ptr.vmem [resolvable:$true] %s510
          %516 = dma.hbm_to_vmem [thread:$0]  %s10, 6144, %s511, [#allocation15], 128, 128, 8
        $region48: #{tpu_custom_call.1} parent=11 // pred_fallthru
          _
        // Predicated region
        $region49: #{tpu_custom_call.1} parent=11 // pred_check
          %p517 = pneg %p279
        $region50: #{tpu_custom_call.1} parent=11 // pred_check_branch
          %519 = sbr.rel (%p517) target = $region52
        $region51: #{tpu_custom_call.1} parent=11 // pred_region
          %s521 = ssub.s32 6144, 6144
          %522 = vsyncadd [#allocation18], %s521
          %s523 = sshll.u32 [#allocation17], 4
          %s524 = int_to_ptr.vmem [resolvable:$true] %s523
          %529 = dma.hbm_to_vmem [thread:$0]  %s11, 6144, %s524, [#allocation18], 128, 128, 8
        $region52: #{tpu_custom_call.1} parent=11 // pred_fallthru
          _
        // Predicated region
        $region53: #{tpu_custom_call.1} parent=11 // pred_check
          %p530 = pneg %p300
        $region54: #{tpu_custom_call.1} parent=11 // pred_check_branch
          %532 = sbr.rel (%p530) target = $region56
        $region55: #{tpu_custom_call.1} parent=11 // pred_region
          _
        $region56: #{tpu_custom_call.1} parent=11 // pred_fallthru
          _
        // Predicated region
        $region57: #{tpu_custom_call.1} parent=11 // pred_check
          %p533 = pneg %p321
        $region58: #{tpu_custom_call.1} parent=11 // pred_check_branch
          %535 = sbr.rel (%p533) target = $region60
        $region59: #{tpu_custom_call.1} parent=11 // pred_region
          %s537 = ssub.s32 2048, 2048
          %538 = vsyncadd [#allocation18], %s537
          %s539 = sshll.u32 [#allocation19], 4
          %s540 = int_to_ptr.vmem [resolvable:$true] %s539
          %545 = dma.hbm_to_vmem [thread:$0]  %s13, 2048, %s540, [#allocation18], 128, 128, 8
        $region60: #{tpu_custom_call.1} parent=11 // pred_fallthru
          _
        // Predicated region
        $region61: #{tpu_custom_call.1} parent=11 // pred_check
          %p546 = pneg %p342
        $region62: #{tpu_custom_call.1} parent=11 // pred_check_branch
          %548 = sbr.rel (%p546) target = $region64
        $region63: #{tpu_custom_call.1} parent=11 // pred_region
          _
        $region64: #{tpu_custom_call.1} parent=11 // pred_fallthru
          _
      $region12: #{tpu_custom_call.1} parent=5 // pred_fallthru
        _
      %p549 = scmp.lt.s32.totalorder %s41, 6
      // Predicated region
      $region65: #{tpu_custom_call.1} parent=5 // pred_check
        %p550 = pneg %p549
      $region66: #{tpu_custom_call.1} parent=5 // pred_check_branch
        %552 = sbr.rel (%p550) target = $region68
      $region67: #{tpu_custom_call.1} parent=5 // pred_region
        // Predicated region
        $region69: #{tpu_custom_call.1} parent=67 // pred_check
          %p553 = pneg %p63
        $region70: #{tpu_custom_call.1} parent=67 // pred_check_branch
          %555 = sbr.rel (%p553) target = $region72
        $region71: #{tpu_custom_call.1} parent=67 // pred_region
          %s556 = sand.u32 %s53, 1
          %s557 = scalar_lea.sflag [#allocation6], %s556
          %s558 = sand.u32 %s53, 1
          %s559 = scalar_lea.vmem [#allocation5], %s558
          %s560 = sld [smem:[#allocation4 + %s41]]
          %s562 = ssub.s32 16, 16
          %563 = vsyncadd %s557, %s562
          %s564 = smul.addr %s560, 16
          %s565 = scalar_lea.hbm %s1, %s564
          %s567 = sshll.u32 %s559, 4
          %s568 = int_to_ptr.vmem [resolvable:$true] %s567
          %570 = dma.hbm_to_vmem [thread:$0]  %s565, 16, %s568, %s557
        $region72: #{tpu_custom_call.1} parent=67 // pred_fallthru
          _
      $region68: #{tpu_custom_call.1} parent=5 // pred_fallthru
        _
      %p571 = scmp.le.s32.totalorder 1, %s41
      %p572 = scmp.lt.s32.totalorder %s41, 7
      %p573 = pnand %p571, %p572
      %p574 = pneg %p573
      // Predicated region
      $region73: #{tpu_custom_call.1} parent=5 // pred_check
        _
      $region74: #{tpu_custom_call.1} parent=5 // pred_check_branch
        %576 = sbr.rel (%p573) target = $region76
      $region75: #{tpu_custom_call.1} parent=5 // pred_region
        %s577 = ssub.s32 %s41, 1
        %s578 = sand.u32 %s56, 1
        %s579 = scalar_lea.sflag [#allocation6], %s578
        %s580 = sand.u32 %s56, 1
        %s581 = scalar_lea.vmem [#allocation5], %s580
        // Predicated region
        $region77: #{tpu_custom_call.1} parent=75 // pred_check
          %p582 = pneg %p69
        $region78: #{tpu_custom_call.1} parent=75 // pred_check_branch
          %584 = sbr.rel (%p582) target = $region80
        $region79: #{tpu_custom_call.1} parent=75 // pred_region
          %585 = dma.done %s579, 16
        $region80: #{tpu_custom_call.1} parent=75 // pred_fallthru
          _
        // Predicated region
        $region81: #{tpu_custom_call.1} parent=75 // pred_check
          %p586 = pneg %p111
        $region82: #{tpu_custom_call.1} parent=75 // pred_check_branch
          %588 = sbr.rel (%p586) target = $region84
        $region83: #{tpu_custom_call.1} parent=75 // pred_region
          %589 = dma.done [#allocation9], 2048
        $region84: #{tpu_custom_call.1} parent=75 // pred_fallthru
          _
        // Predicated region
        $region85: #{tpu_custom_call.1} parent=75 // pred_check
          %p590 = pneg %p132
        $region86: #{tpu_custom_call.1} parent=75 // pred_check_branch
          %592 = sbr.rel (%p590) target = $region88
        $region87: #{tpu_custom_call.1} parent=75 // pred_region
          %593 = dma.done [#allocation9], 2048
        $region88: #{tpu_custom_call.1} parent=75 // pred_fallthru
          _
        // Predicated region
        $region89: #{tpu_custom_call.1} parent=75 // pred_check
          %p594 = pneg %p153
        $region90: #{tpu_custom_call.1} parent=75 // pred_check_branch
          %596 = sbr.rel (%p594) target = $region92
        $region91: #{tpu_custom_call.1} parent=75 // pred_region
          %597 = dma.done [#allocation12], 2048
        $region92: #{tpu_custom_call.1} parent=75 // pred_fallthru
          _
        // Predicated region
        $region93: #{tpu_custom_call.1} parent=75 // pred_check
          %p598 = pneg %p195
        $region94: #{tpu_custom_call.1} parent=75 // pred_check_branch
          %600 = sbr.rel (%p598) target = $region96
        $region95: #{tpu_custom_call.1} parent=75 // pred_region
          %601 = dma.done [#allocation12], 2048
        $region96: #{tpu_custom_call.1} parent=75 // pred_fallthru
          _
        // Predicated region
        $region97: #{tpu_custom_call.1} parent=75 // pred_check
          %p602 = pneg %p216
        $region98: #{tpu_custom_call.1} parent=75 // pred_check_branch
          %604 = sbr.rel (%p602) target = $region100
        $region99: #{tpu_custom_call.1} parent=75 // pred_region
          %605 = dma.done [#allocation15], 2048
        $region100: #{tpu_custom_call.1} parent=75 // pred_fallthru
          _
        // Predicated region
        $region101: #{tpu_custom_call.1} parent=75 // pred_check
          %p606 = pneg %p258
        $region102: #{tpu_custom_call.1} parent=75 // pred_check_branch
          %608 = sbr.rel (%p606) target = $region104
        $region103: #{tpu_custom_call.1} parent=75 // pred_region
          %609 = dma.done [#allocation15], 6144
        $region104: #{tpu_custom_call.1} parent=75 // pred_fallthru
          _
        // Predicated region
        $region105: #{tpu_custom_call.1} parent=75 // pred_check
          %p610 = pneg %p279
        $region106: #{tpu_custom_call.1} parent=75 // pred_check_branch
          %612 = sbr.rel (%p610) target = $region108
        $region107: #{tpu_custom_call.1} parent=75 // pred_region
          %613 = dma.done [#allocation18], 6144
        $region108: #{tpu_custom_call.1} parent=75 // pred_fallthru
          _
        // Predicated region
        $region109: #{tpu_custom_call.1} parent=75 // pred_check
          %p614 = pneg %p321
        $region110: #{tpu_custom_call.1} parent=75 // pred_check_branch
          %616 = sbr.rel (%p614) target = $region112
        $region111: #{tpu_custom_call.1} parent=75 // pred_region
          %617 = dma.done [#allocation18], 2048
        $region112: #{tpu_custom_call.1} parent=75 // pred_fallthru
          _
        %s618 = sand.u32 %s56, 1
        %s619 = scalar_lea.sflag [#allocation6], %s618
        %s620 = sand.u32 %s56, 1
        %s621 = scalar_lea.vmem [#allocation5], %s620
        %p622 = pneg %p69
        %p623 = pneg %p66
        %p624 = pneg %p90
        %p625 = pneg %p87
        %p626 = pneg %p111
        %p627 = pneg %p108
        %p628 = pneg %p132
        %p629 = pneg %p129
        %p630 = pneg %p153
        %p631 = pneg %p150
        %p632 = pneg %p174
        %p633 = pneg %p171
        %p634 = pneg %p195
        %p635 = pneg %p192
        %p636 = pneg %p216
        %p637 = pneg %p213
        %p638 = pneg %p237
        %p639 = pneg %p234
        %p640 = pneg %p258
        %p641 = pneg %p255
        %p642 = pneg %p279
        %p643 = pneg %p276
        %p644 = pneg %p300
        %p645 = pneg %p297
        %p646 = pneg %p321
        %p647 = pneg %p318
        %p648 = pneg %p342
        %p649 = pneg %p339
        %p650 = pneg %p368
        %p651 = pneg %p365
        %s652 = sand.u32 %s355, 1
        %s653 = scalar_lea.sflag [#allocation7], %s652
        %s654 = sand.u32 %s355, 1
        %s655 = scalar_lea.vmem [#allocation20], %s654
        %p656 = pneg %p394
        %p657 = pneg %p391
        %s658 = sand.u32 %s46, 1
        %s659 = scalar_lea.sflag [#allocation22], %s658
        %s660 = sand.u32 %s381, 1
        %s661 = scalar_lea.vmem [#allocation21], %s660
        %p662 = pneg %p415
        %p663 = pneg %p412
        %s664 = sld [smem:[#allocation4 + %s46]]
        %p665 = scmp.eq.s32.totalorder %s46, 0
        // Predicated region
        $region113: #{tpu_custom_call.1} parent=75 // pred_check
          %p666 = pneg %p665
        $region114: #{tpu_custom_call.1} parent=75 // pred_check_branch
          %668 = sbr.rel (%p666) target = $region116
        $region115: #{tpu_custom_call.1} parent=75 // pred_region
          %v669 = vld [vmem:[%s2] sm:$0x1]
          %670 = vst [vmem:[#allocation2] sm:$0x1] %v669
        $region116: #{tpu_custom_call.1} parent=75 // pred_fallthru
          _
        %v671 = vld [vmem:[%s581] sm:$0x1]
        %v672 = vld [vmem:[#allocation2] sm:$0x1]
        %v673 = vld [vmem:[#allocation10] sm:$0xff]
        %v674 = vld [vmem:[#allocation10 + $0x8] sm:$0xff]
        %v675 = vld [vmem:[#allocation10 + $0x10] sm:$0xff]
        %v676 = vld [vmem:[#allocation10 + $0x18] sm:$0xff]
        %v677 = vld [vmem:[#allocation10 + $0x20] sm:$0xff]
        %v678 = vld [vmem:[#allocation10 + $0x28] sm:$0xff]
        %v679 = vld [vmem:[#allocation10 + $0x30] sm:$0xff]
        %v680 = vld [vmem:[#allocation10 + $0x38] sm:$0xff]
        %v681 = vld [vmem:[#allocation10 + $0x40] sm:$0xff]
        %v682 = vld [vmem:[#allocation10 + $0x48] sm:$0xff]
        %v683 = vld [vmem:[#allocation10 + $0x50] sm:$0xff]
        %v684 = vld [vmem:[#allocation10 + $0x58] sm:$0xff]
        %v685 = vld [vmem:[#allocation10 + $0x60] sm:$0xff]
        %v686 = vld [vmem:[#allocation10 + $0x68] sm:$0xff]
        %v687 = vld [vmem:[#allocation10 + $0x70] sm:$0xff]
        %v688 = vld [vmem:[#allocation10 + $0x78] sm:$0xff]
        %v689 = vld [vmem:[#allocation11] sm:$0xff]
        %v690 = vld [vmem:[#allocation11 + $0x8] sm:$0xff]
        %v691 = vld [vmem:[#allocation11 + $0x10] sm:$0xff]
        %v692 = vld [vmem:[#allocation11 + $0x18] sm:$0xff]
        %v693 = vld [vmem:[#allocation11 + $0x20] sm:$0xff]
        %v694 = vld [vmem:[#allocation11 + $0x28] sm:$0xff]
        %v695 = vld [vmem:[#allocation11 + $0x30] sm:$0xff]
        %v696 = vld [vmem:[#allocation11 + $0x38] sm:$0xff]
        %v697 = vld [vmem:[#allocation11 + $0x40] sm:$0xff]
        %v698 = vld [vmem:[#allocation11 + $0x48] sm:$0xff]
        %v699 = vld [vmem:[#allocation11 + $0x50] sm:$0xff]
        %v700 = vld [vmem:[#allocation11 + $0x58] sm:$0xff]
        %v701 = vld [vmem:[#allocation11 + $0x60] sm:$0xff]
        %v702 = vld [vmem:[#allocation11 + $0x68] sm:$0xff]
        %v703 = vld [vmem:[#allocation11 + $0x70] sm:$0xff]
        %v704 = vld [vmem:[#allocation11 + $0x78] sm:$0xff]
        %705 = vmatprep.subr.mxu0 0.0
        %706 = vmatpush1.msra.mxu0 %v689
        %707 = vmatprep.subr.mxu0 0.0
        %708 = vmatpush1.msra.mxu0 %v690
        %709 = vmatprep.subr.mxu0 0.0
        %710 = vmatpush1.msra.mxu0 %v691
        %711 = vmatprep.subr.mxu0 0.0
        %712 = vmatpush1.msra.mxu0 %v692
        %713 = vmatprep.subr.mxu0 0.0
        %714 = vmatpush1.msra.mxu0 %v693
        %715 = vmatprep.subr.mxu0 0.0
        %716 = vmatpush1.msra.mxu0 %v694
        %717 = vmatprep.subr.mxu0 0.0
        %718 = vmatpush1.msra.mxu0 %v695
        %719 = vmatprep.subr.mxu0 0.0
        %720 = vmatpush1.msra.mxu0 %v696
        %721 = vmatprep.subr.mxu0 0.0
        %722 = vmatpush1.msra.mxu0 %v697
        %723 = vmatprep.subr.mxu0 0.0
        %724 = vmatpush1.msra.mxu0 %v698
        %725 = vmatprep.subr.mxu0 0.0
        %726 = vmatpush1.msra.mxu0 %v699
        %727 = vmatprep.subr.mxu0 0.0
        %728 = vmatpush1.msra.mxu0 %v700
        %729 = vmatprep.subr.mxu0 0.0
        %730 = vmatpush1.msra.mxu0 %v701
        %731 = vmatprep.subr.mxu0 0.0
        %732 = vmatpush1.msra.mxu0 %v702
        %733 = vmatprep.subr.mxu0 0.0
        %734 = vmatpush1.msra.mxu0 %v703
        %735 = vmatprep.subr.mxu0 0.0
        %736 = vmatpush1.msra.mxu0 %v704
        %737 = vmatprep.subr.mxu0 0.0
        %738 = vmatpush1.msra.mxu0 0.0
        %739 = vmatprep.subr.mxu0 0.0
        %740 = vmatpush1.msra.mxu0 0.0
        %741 = vmatprep.subr.mxu0 0.0
        %742 = vmatpush1.msra.mxu0 0.0
        %743 = vmatprep.subr.mxu0 0.0
        %744 = vmatpush1.msra.mxu0 0.0
        %745 = vmatprep.subr.mxu0 0.0
        %746 = vmatpush1.msra.mxu0 0.0
        %747 = vmatprep.subr.mxu0 0.0
        %748 = vmatpush1.msra.mxu0 0.0
        %749 = vmatprep.subr.mxu0 0.0
        %750 = vmatpush1.msra.mxu0 0.0
        %751 = vmatprep.subr.mxu0 0.0
        %752 = vmatpush1.msra.mxu0 0.0
        %753 = vmatprep.subr.mxu0 0.0
        %754 = vmatpush1.msra.mxu0 0.0
        %755 = vmatprep.subr.mxu0 0.0
        %756 = vmatpush1.msra.mxu0 0.0
        %757 = vmatprep.subr.mxu0 0.0
        %758 = vmatpush1.msra.mxu0 0.0
        %759 = vmatprep.subr.mxu0 0.0
        %760 = vmatpush1.msra.mxu0 0.0
        %761 = vmatprep.subr.mxu0 0.0
        %762 = vmatpush1.msra.mxu0 0.0
        %763 = vmatprep.subr.mxu0 0.0
        %764 = vmatpush1.msra.mxu0 0.0
        %765 = vmatprep.subr.mxu0 0.0
        %766 = vmatpush1.msra.mxu0 0.0
        %767 = vmatprep.subr.mxu0 0.0
        %768 = vmatpush1.msra.mxu0 0.0
        %769 = vmatprep.mubr.f32.mxu0 0.0
        %770 = vmatmul.mubr.f32.gmra.mrb[0].mxu0 %v672
        %v771 = vpop.f32.mrb[0].mxu0
        %v772 = vadd.f32 0.0, %v771
        %v773 = vpop.f32.mrb[0].mxu0
        %774 = vdwg.mxu0
        %775 = vmatprep.subr.mxu0 0.0
        %776 = vmatpush1.msra.mxu0 %v673
        %777 = vmatprep.subr.mxu0 0.0
        %778 = vmatpush1.msra.mxu0 %v674
        %779 = vmatprep.subr.mxu0 0.0
        %780 = vmatpush1.msra.mxu0 %v675
        %781 = vmatprep.subr.mxu0 0.0
        %782 = vmatpush1.msra.mxu0 %v676
        %783 = vmatprep.subr.mxu0 0.0
        %784 = vmatpush1.msra.mxu0 %v677
        %785 = vmatprep.subr.mxu0 0.0
        %786 = vmatpush1.msra.mxu0 %v678
        %787 = vmatprep.subr.mxu0 0.0
        %788 = vmatpush1.msra.mxu0 %v679
        %789 = vmatprep.subr.mxu0 0.0
        %790 = vmatpush1.msra.mxu0 %v680
        %791 = vmatprep.subr.mxu0 0.0
        %792 = vmatpush1.msra.mxu0 %v681
        %793 = vmatprep.subr.mxu0 0.0
        %794 = vmatpush1.msra.mxu0 %v682
        %795 = vmatprep.subr.mxu0 0.0
        %796 = vmatpush1.msra.mxu0 %v683
        %797 = vmatprep.subr.mxu0 0.0
        %798 = vmatpush1.msra.mxu0 %v684
        %799 = vmatprep.subr.mxu0 0.0
        %800 = vmatpush1.msra.mxu0 %v685
        %801 = vmatprep.subr.mxu0 0.0
        %802 = vmatpush1.msra.mxu0 %v686
        %803 = vmatprep.subr.mxu0 0.0
        %804 = vmatpush1.msra.mxu0 %v687
        %805 = vmatprep.subr.mxu0 0.0
        %806 = vmatpush1.msra.mxu0 %v688
        %807 = vmatprep.subr.mxu0 0.0
        %808 = vmatpush1.msra.mxu0 0.0
        %809 = vmatprep.subr.mxu0 0.0
        %810 = vmatpush1.msra.mxu0 0.0
        %811 = vmatprep.subr.mxu0 0.0
        %812 = vmatpush1.msra.mxu0 0.0
        %813 = vmatprep.subr.mxu0 0.0
        %814 = vmatpush1.msra.mxu0 0.0
        %815 = vmatprep.subr.mxu0 0.0
        %816 = vmatpush1.msra.mxu0 0.0
        %817 = vmatprep.subr.mxu0 0.0
        %818 = vmatpush1.msra.mxu0 0.0
        %819 = vmatprep.subr.mxu0 0.0
        %820 = vmatpush1.msra.mxu0 0.0
        %821 = vmatprep.subr.mxu0 0.0
        %822 = vmatpush1.msra.mxu0 0.0
        %823 = vmatprep.subr.mxu0 0.0
        %824 = vmatpush1.msra.mxu0 0.0
        %825 = vmatprep.subr.mxu0 0.0
        %826 = vmatpush1.msra.mxu0 0.0
        %827 = vmatprep.subr.mxu0 0.0
        %828 = vmatpush1.msra.mxu0 0.0
        %829 = vmatprep.subr.mxu0 0.0
        %830 = vmatpush1.msra.mxu0 0.0
        %831 = vmatprep.subr.mxu0 0.0
        %832 = vmatpush1.msra.mxu0 0.0
        %833 = vmatprep.subr.mxu0 0.0
        %834 = vmatpush1.msra.mxu0 0.0
        %835 = vmatprep.subr.mxu0 0.0
        %836 = vmatpush1.msra.mxu0 0.0
        %837 = vmatprep.subr.mxu0 0.0
        %838 = vmatpush1.msra.mxu0 0.0
        %839 = vmatprep.mubr.f32.mxu0 0.0
        %840 = vmatmul.mubr.f32.gmra.mrb[0].mxu0 %v671
        %v841 = vpop.f32.mrb[0].mxu0
        %v842 = vadd.f32 %v772, %v841
        %v843 = vpop.f32.mrb[0].mxu0
        %844 = vdwg.mxu0
        %v845 = vld [vmem:[%s6] sm:$0x1]
        %v846 = vadd.f32 %v842, %v845
        %vm847 = vcmask 1040384
        %v848 = vsel %vm847, %v846, -inf
        %849 = vmax.xlane.f32.xlu0 %v848
        %v850 = vpop.xlane.xlu0 %849
        %v851 = vsub.f32 %v846, %v850
        %v852 = vmul.f32 %v851, 1.442695
        %v853 = vpow.pop %v852
        %v854 = vsel %vm847, %v853, 0.0
        %855 = vadd.xlane.f32.xlu0 %v854
        %v856 = vpop.xlane.xlu0 %855
        %v857 = vrcp.pop %v856
        %v858 = vmul.f32 %v853, %v857
        %v859 = vld [vmem:[#allocation8] sm:$0xff]
        %v860 = vld [vmem:[#allocation8 + $0x8] sm:$0xff]
        %v861 = vld [vmem:[#allocation8 + $0x10] sm:$0xff]
        %v862 = vld [vmem:[#allocation8 + $0x18] sm:$0xff]
        %v863 = vld [vmem:[#allocation8 + $0x20] sm:$0xff]
        %v864 = vld [vmem:[#allocation8 + $0x28] sm:$0xff]
        %v865 = vld [vmem:[#allocation8 + $0x30] sm:$0xff]
        %v866 = vld [vmem:[#allocation8 + $0x38] sm:$0xff]
        %v867 = vld [vmem:[#allocation8 + $0x40] sm:$0xff]
        %v868 = vld [vmem:[#allocation8 + $0x48] sm:$0xff]
        %v869 = vld [vmem:[#allocation8 + $0x50] sm:$0xff]
        %v870 = vld [vmem:[#allocation8 + $0x58] sm:$0xff]
        %v871 = vld [vmem:[#allocation8 + $0x60] sm:$0xff]
        %v872 = vld [vmem:[#allocation8 + $0x68] sm:$0xff]
        %v873 = vld [vmem:[#allocation8 + $0x70] sm:$0xff]
        %v874 = vld [vmem:[#allocation8 + $0x78] sm:$0xff]
        %875 = vmatprep.subr.mxu0 0.0
        %876 = vmatpush1.msra.mxu0 %v859
        %877 = vmatprep.subr.mxu0 0.0
        %878 = vmatpush1.msra.mxu0 %v860
        %879 = vmatprep.subr.mxu0 0.0
        %880 = vmatpush1.msra.mxu0 %v861
        %881 = vmatprep.subr.mxu0 0.0
        %882 = vmatpush1.msra.mxu0 %v862
        %883 = vmatprep.subr.mxu0 0.0
        %884 = vmatpush1.msra.mxu0 %v863
        %885 = vmatprep.subr.mxu0 0.0
        %886 = vmatpush1.msra.mxu0 %v864
        %887 = vmatprep.subr.mxu0 0.0
        %888 = vmatpush1.msra.mxu0 %v865
        %889 = vmatprep.subr.mxu0 0.0
        %890 = vmatpush1.msra.mxu0 %v866
        %891 = vmatprep.subr.mxu0 0.0
        %892 = vmatpush1.msra.mxu0 %v867
        %893 = vmatprep.subr.mxu0 0.0
        %894 = vmatpush1.msra.mxu0 %v868
        %895 = vmatprep.subr.mxu0 0.0
        %896 = vmatpush1.msra.mxu0 %v869
        %897 = vmatprep.subr.mxu0 0.0
        %898 = vmatpush1.msra.mxu0 %v870
        %899 = vmatprep.subr.mxu0 0.0
        %900 = vmatpush1.msra.mxu0 %v871
        %901 = vmatprep.subr.mxu0 0.0
        %902 = vmatpush1.msra.mxu0 %v872
        %903 = vmatprep.subr.mxu0 0.0
        %904 = vmatpush1.msra.mxu0 %v873
        %905 = vmatprep.subr.mxu0 0.0
        %906 = vmatpush1.msra.mxu0 %v874
        %907 = vmatprep.subr.mxu0 0.0
        %908 = vmatpush1.msra.mxu0 0.0
        %909 = vmatprep.subr.mxu0 0.0
        %910 = vmatpush1.msra.mxu0 0.0
        %911 = vmatprep.subr.mxu0 0.0
        %912 = vmatpush1.msra.mxu0 0.0
        %913 = vmatprep.subr.mxu0 0.0
        %914 = vmatpush1.msra.mxu0 0.0
        %915 = vmatprep.subr.mxu0 0.0
        %916 = vmatpush1.msra.mxu0 0.0
        %917 = vmatprep.subr.mxu0 0.0
        %918 = vmatpush1.msra.mxu0 0.0
        %919 = vmatprep.subr.mxu0 0.0
        %920 = vmatpush1.msra.mxu0 0.0
        %921 = vmatprep.subr.mxu0 0.0
        %922 = vmatpush1.msra.mxu0 0.0
        %923 = vmatprep.subr.mxu0 0.0
        %924 = vmatpush1.msra.mxu0 0.0
        %925 = vmatprep.subr.mxu0 0.0
        %926 = vmatpush1.msra.mxu0 0.0
        %927 = vmatprep.subr.mxu0 0.0
        %928 = vmatpush1.msra.mxu0 0.0
        %929 = vmatprep.subr.mxu0 0.0
        %930 = vmatpush1.msra.mxu0 0.0
        %931 = vmatprep.subr.mxu0 0.0
        %932 = vmatpush1.msra.mxu0 0.0
        %933 = vmatprep.subr.mxu0 0.0
        %934 = vmatpush1.msra.mxu0 0.0
        %935 = vmatprep.subr.mxu0 0.0
        %936 = vmatpush1.msra.mxu0 0.0
        %937 = vmatprep.subr.mxu0 0.0
        %938 = vmatpush1.msra.mxu0 0.0
        %939 = vmatprep.mubr.f32.mxu0 0.0
        %940 = vmatmul.mubr.f32.gmra.mrb[0].mxu0 %v858
        %v941 = vpop.f32.mrb[0].mxu0
        %v942 = vadd.f32 0.0, %v941
        %v943 = vpop.f32.mrb[0].mxu0
        %944 = vdwg.mxu0
        %v945 = vld [vmem:[#allocation13] sm:$0xff]
        %v946 = vld [vmem:[#allocation13 + $0x8] sm:$0xff]
        %v947 = vld [vmem:[#allocation13 + $0x10] sm:$0xff]
        %v948 = vld [vmem:[#allocation13 + $0x18] sm:$0xff]
        %v949 = vld [vmem:[#allocation13 + $0x20] sm:$0xff]
        %v950 = vld [vmem:[#allocation13 + $0x28] sm:$0xff]
        %v951 = vld [vmem:[#allocation13 + $0x30] sm:$0xff]
        %v952 = vld [vmem:[#allocation13 + $0x38] sm:$0xff]
        %v953 = vld [vmem:[#allocation13 + $0x40] sm:$0xff]
        %v954 = vld [vmem:[#allocation13 + $0x48] sm:$0xff]
        %v955 = vld [vmem:[#allocation13 + $0x50] sm:$0xff]
        %v956 = vld [vmem:[#allocation13 + $0x58] sm:$0xff]
        %v957 = vld [vmem:[#allocation13 + $0x60] sm:$0xff]
        %v958 = vld [vmem:[#allocation13 + $0x68] sm:$0xff]
        %v959 = vld [vmem:[#allocation13 + $0x70] sm:$0xff]
        %v960 = vld [vmem:[#allocation13 + $0x78] sm:$0xff]
        %v961 = vld [vmem:[#allocation14] sm:$0xff]
        %v962 = vld [vmem:[#allocation14 + $0x8] sm:$0xff]
        %v963 = vld [vmem:[#allocation14 + $0x10] sm:$0xff]
        %v964 = vld [vmem:[#allocation14 + $0x18] sm:$0xff]
        %v965 = vld [vmem:[#allocation14 + $0x20] sm:$0xff]
        %v966 = vld [vmem:[#allocation14 + $0x28] sm:$0xff]
        %v967 = vld [vmem:[#allocation14 + $0x30] sm:$0xff]
        %v968 = vld [vmem:[#allocation14 + $0x38] sm:$0xff]
        %v969 = vld [vmem:[#allocation14 + $0x40] sm:$0xff]
        %v970 = vld [vmem:[#allocation14 + $0x48] sm:$0xff]
        %v971 = vld [vmem:[#allocation14 + $0x50] sm:$0xff]
        %v972 = vld [vmem:[#allocation14 + $0x58] sm:$0xff]
        %v973 = vld [vmem:[#allocation14 + $0x60] sm:$0xff]
        %v974 = vld [vmem:[#allocation14 + $0x68] sm:$0xff]
        %v975 = vld [vmem:[#allocation14 + $0x70] sm:$0xff]
        %v976 = vld [vmem:[#allocation14 + $0x78] sm:$0xff]
        %977 = vmatprep.subr.mxu0 0.0
        %978 = vmatpush1.msra.mxu0 %v961
        %979 = vmatprep.subr.mxu0 0.0
        %980 = vmatpush1.msra.mxu0 %v962
        %981 = vmatprep.subr.mxu0 0.0
        %982 = vmatpush1.msra.mxu0 %v963
        %983 = vmatprep.subr.mxu0 0.0
        %984 = vmatpush1.msra.mxu0 %v964
        %985 = vmatprep.subr.mxu0 0.0
        %986 = vmatpush1.msra.mxu0 %v965
        %987 = vmatprep.subr.mxu0 0.0
        %988 = vmatpush1.msra.mxu0 %v966
        %989 = vmatprep.subr.mxu0 0.0
        %990 = vmatpush1.msra.mxu0 %v967
        %991 = vmatprep.subr.mxu0 0.0
        %992 = vmatpush1.msra.mxu0 %v968
        %993 = vmatprep.subr.mxu0 0.0
        %994 = vmatpush1.msra.mxu0 %v969
        %995 = vmatprep.subr.mxu0 0.0
        %996 = vmatpush1.msra.mxu0 %v970
        %997 = vmatprep.subr.mxu0 0.0
        %998 = vmatpush1.msra.mxu0 %v971
        %999 = vmatprep.subr.mxu0 0.0
        %1000 = vmatpush1.msra.mxu0 %v972
        %1001 = vmatprep.subr.mxu0 0.0
        %1002 = vmatpush1.msra.mxu0 %v973
        %1003 = vmatprep.subr.mxu0 0.0
        %1004 = vmatpush1.msra.mxu0 %v974
        %1005 = vmatprep.subr.mxu0 0.0
        %1006 = vmatpush1.msra.mxu0 %v975
        %1007 = vmatprep.subr.mxu0 0.0
        %1008 = vmatpush1.msra.mxu0 %v976
        %1009 = vmatprep.subr.mxu0 0.0
        %1010 = vmatpush1.msra.mxu0 0.0
        %1011 = vmatprep.subr.mxu0 0.0
        %1012 = vmatpush1.msra.mxu0 0.0
        %1013 = vmatprep.subr.mxu0 0.0
        %1014 = vmatpush1.msra.mxu0 0.0
        %1015 = vmatprep.subr.mxu0 0.0
        %1016 = vmatpush1.msra.mxu0 0.0
        %1017 = vmatprep.subr.mxu0 0.0
        %1018 = vmatpush1.msra.mxu0 0.0
        %1019 = vmatprep.subr.mxu0 0.0
        %1020 = vmatpush1.msra.mxu0 0.0
        %1021 = vmatprep.subr.mxu0 0.0
        %1022 = vmatpush1.msra.mxu0 0.0
        %1023 = vmatprep.subr.mxu0 0.0
        %1024 = vmatpush1.msra.mxu0 0.0
        %1025 = vmatprep.subr.mxu0 0.0
        %1026 = vmatpush1.msra.mxu0 0.0
        %1027 = vmatprep.subr.mxu0 0.0
        %1028 = vmatpush1.msra.mxu0 0.0
        %1029 = vmatprep.subr.mxu0 0.0
        %1030 = vmatpush1.msra.mxu0 0.0
        %1031 = vmatprep.subr.mxu0 0.0
        %1032 = vmatpush1.msra.mxu0 0.0
        %1033 = vmatprep.subr.mxu0 0.0
        %1034 = vmatpush1.msra.mxu0 0.0
        %1035 = vmatprep.subr.mxu0 0.0
        %1036 = vmatpush1.msra.mxu0 0.0
        %1037 = vmatprep.subr.mxu0 0.0
        %1038 = vmatpush1.msra.mxu0 0.0
        %1039 = vmatprep.subr.mxu0 0.0
        %1040 = vmatpush1.msra.mxu0 0.0
        %1041 = vmatprep.mubr.f32.mxu0 0.0
        %1042 = vmatmul.mubr.f32.gmra.mrb[0].mxu0 %v942
        %v1043 = vpop.f32.mrb[0].mxu0
        %v1044 = vadd.f32 0.0, %v1043
        %v1045 = vpop.f32.mrb[0].mxu0
        %1046 = vdwg.mxu0
        %1047 = vmatprep.subr.mxu0 0.0
        %1048 = vmatpush1.msra.mxu0 %v945
        %1049 = vmatprep.subr.mxu0 0.0
        %1050 = vmatpush1.msra.mxu0 %v946
        %1051 = vmatprep.subr.mxu0 0.0
        %1052 = vmatpush1.msra.mxu0 %v947
        %1053 = vmatprep.subr.mxu0 0.0
        %1054 = vmatpush1.msra.mxu0 %v948
        %1055 = vmatprep.subr.mxu0 0.0
        %1056 = vmatpush1.msra.mxu0 %v949
        %1057 = vmatprep.subr.mxu0 0.0
        %1058 = vmatpush1.msra.mxu0 %v950
        %1059 = vmatprep.subr.mxu0 0.0
        %1060 = vmatpush1.msra.mxu0 %v951
        %1061 = vmatprep.subr.mxu0 0.0
        %1062 = vmatpush1.msra.mxu0 %v952
        %1063 = vmatprep.subr.mxu0 0.0
        %1064 = vmatpush1.msra.mxu0 %v953
        %1065 = vmatprep.subr.mxu0 0.0
        %1066 = vmatpush1.msra.mxu0 %v954
        %1067 = vmatprep.subr.mxu0 0.0
        %1068 = vmatpush1.msra.mxu0 %v955
        %1069 = vmatprep.subr.mxu0 0.0
        %1070 = vmatpush1.msra.mxu0 %v956
        %1071 = vmatprep.subr.mxu0 0.0
        %1072 = vmatpush1.msra.mxu0 %v957
        %1073 = vmatprep.subr.mxu0 0.0
        %1074 = vmatpush1.msra.mxu0 %v958
        %1075 = vmatprep.subr.mxu0 0.0
        %1076 = vmatpush1.msra.mxu0 %v959
        %1077 = vmatprep.subr.mxu0 0.0
        %1078 = vmatpush1.msra.mxu0 %v960
        %1079 = vmatprep.subr.mxu0 0.0
        %1080 = vmatpush1.msra.mxu0 0.0
        %1081 = vmatprep.subr.mxu0 0.0
        %1082 = vmatpush1.msra.mxu0 0.0
        %1083 = vmatprep.subr.mxu0 0.0
        %1084 = vmatpush1.msra.mxu0 0.0
        %1085 = vmatprep.subr.mxu0 0.0
        %1086 = vmatpush1.msra.mxu0 0.0
        %1087 = vmatprep.subr.mxu0 0.0
        %1088 = vmatpush1.msra.mxu0 0.0
        %1089 = vmatprep.subr.mxu0 0.0
        %1090 = vmatpush1.msra.mxu0 0.0
        %1091 = vmatprep.subr.mxu0 0.0
        %1092 = vmatpush1.msra.mxu0 0.0
        %1093 = vmatprep.subr.mxu0 0.0
        %1094 = vmatpush1.msra.mxu0 0.0
        %1095 = vmatprep.subr.mxu0 0.0
        %1096 = vmatpush1.msra.mxu0 0.0
        %1097 = vmatprep.subr.mxu0 0.0
        %1098 = vmatpush1.msra.mxu0 0.0
        %1099 = vmatprep.subr.mxu0 0.0
        %1100 = vmatpush1.msra.mxu0 0.0
        %1101 = vmatprep.subr.mxu0 0.0
        %1102 = vmatpush1.msra.mxu0 0.0
        %1103 = vmatprep.subr.mxu0 0.0
        %1104 = vmatpush1.msra.mxu0 0.0
        %1105 = vmatprep.subr.mxu0 0.0
        %1106 = vmatpush1.msra.mxu0 0.0
        %1107 = vmatprep.subr.mxu0 0.0
        %1108 = vmatpush1.msra.mxu0 0.0
        %1109 = vmatprep.subr.mxu0 0.0
        %1110 = vmatpush1.msra.mxu0 0.0
        %1111 = vmatprep.mubr.f32.mxu0 0.0
        %1112 = vmatmul.mubr.f32.gmra.mrb[0].mxu0 %v671
        %v1113 = vpop.f32.mrb[0].mxu0
        %v1114 = vadd.f32 %v1044, %v1113
        %v1115 = vpop.f32.mrb[0].mxu0
        %1116 = vdwg.mxu0
        %v1117 = vld [vmem:[%s9] sm:$0x1]
        %v1118 = vadd.f32 %v1114, %v1117
        %v1119 = vmax.f32 %v1118, 0.0
        %v1120 = vld [vmem:[#allocation16] sm:$0xff]
        %v1121 = vld [vmem:[#allocation16 + $0x8] sm:$0xff]
        %v1122 = vld [vmem:[#allocation16 + $0x10] sm:$0xff]
        %v1123 = vld [vmem:[#allocation16 + $0x18] sm:$0xff]
        %v1124 = vld [vmem:[#allocation16 + $0x20] sm:$0xff]
        %v1125 = vld [vmem:[#allocation16 + $0x28] sm:$0xff]
        %v1126 = vld [vmem:[#allocation16 + $0x30] sm:$0xff]
        %v1127 = vld [vmem:[#allocation16 + $0x38] sm:$0xff]
        %v1128 = vld [vmem:[#allocation16 + $0x40] sm:$0xff]
        %v1129 = vld [vmem:[#allocation16 + $0x48] sm:$0xff]
        %v1130 = vld [vmem:[#allocation16 + $0x50] sm:$0xff]
        %v1131 = vld [vmem:[#allocation16 + $0x58] sm:$0xff]
        %v1132 = vld [vmem:[#allocation16 + $0x60] sm:$0xff]
        %v1133 = vld [vmem:[#allocation16 + $0x68] sm:$0xff]
        %v1134 = vld [vmem:[#allocation16 + $0x70] sm:$0xff]
        %v1135 = vld [vmem:[#allocation16 + $0x78] sm:$0xff]
        %v1136 = vld [vmem:[#allocation17] sm:$0xff]
        %v1137 = vld [vmem:[#allocation17 + $0x8] sm:$0xff]
        %v1138 = vld [vmem:[#allocation17 + $0x10] sm:$0xff]
        %v1139 = vld [vmem:[#allocation17 + $0x18] sm:$0xff]
        %v1140 = vld [vmem:[#allocation17 + $0x20] sm:$0xff]
        %v1141 = vld [vmem:[#allocation17 + $0x28] sm:$0xff]
        %v1142 = vld [vmem:[#allocation17 + $0x30] sm:$0xff]
        %v1143 = vld [vmem:[#allocation17 + $0x38] sm:$0xff]
        %v1144 = vld [vmem:[#allocation17 + $0x40] sm:$0xff]
        %v1145 = vld [vmem:[#allocation17 + $0x48] sm:$0xff]
        %v1146 = vld [vmem:[#allocation17 + $0x50] sm:$0xff]
        %v1147 = vld [vmem:[#allocation17 + $0x58] sm:$0xff]
        %v1148 = vld [vmem:[#allocation17 + $0x60] sm:$0xff]
        %v1149 = vld [vmem:[#allocation17 + $0x68] sm:$0xff]
        %v1150 = vld [vmem:[#allocation17 + $0x70] sm:$0xff]
        %v1151 = vld [vmem:[#allocation17 + $0x78] sm:$0xff]
        %1152 = vmatprep.subr.mxu0 0.0
        %1153 = vmatpush1.msra.mxu0 %v1136
        %1154 = vmatprep.subr.mxu0 0.0
        %1155 = vmatpush1.msra.mxu0 %v1137
        %1156 = vmatprep.subr.mxu0 0.0
        %1157 = vmatpush1.msra.mxu0 %v1138
        %1158 = vmatprep.subr.mxu0 0.0
        %1159 = vmatpush1.msra.mxu0 %v1139
        %1160 = vmatprep.subr.mxu0 0.0
        %1161 = vmatpush1.msra.mxu0 %v1140
        %1162 = vmatprep.subr.mxu0 0.0
        %1163 = vmatpush1.msra.mxu0 %v1141
        %1164 = vmatprep.subr.mxu0 0.0
        %1165 = vmatpush1.msra.mxu0 %v1142
        %1166 = vmatprep.subr.mxu0 0.0
        %1167 = vmatpush1.msra.mxu0 %v1143
        %1168 = vmatprep.subr.mxu0 0.0
        %1169 = vmatpush1.msra.mxu0 %v1144
        %1170 = vmatprep.subr.mxu0 0.0
        %1171 = vmatpush1.msra.mxu0 %v1145
        %1172 = vmatprep.subr.mxu0 0.0
        %1173 = vmatpush1.msra.mxu0 %v1146
        %1174 = vmatprep.subr.mxu0 0.0
        %1175 = vmatpush1.msra.mxu0 %v1147
        %1176 = vmatprep.subr.mxu0 0.0
        %1177 = vmatpush1.msra.mxu0 %v1148
        %1178 = vmatprep.subr.mxu0 0.0
        %1179 = vmatpush1.msra.mxu0 %v1149
        %1180 = vmatprep.subr.mxu0 0.0
        %1181 = vmatpush1.msra.mxu0 %v1150
        %1182 = vmatprep.subr.mxu0 0.0
        %1183 = vmatpush1.msra.mxu0 %v1151
        %1184 = vmatprep.subr.mxu0 0.0
        %1185 = vmatpush1.msra.mxu0 0.0
        %1186 = vmatprep.subr.mxu0 0.0
        %1187 = vmatpush1.msra.mxu0 0.0
        %1188 = vmatprep.subr.mxu0 0.0
        %1189 = vmatpush1.msra.mxu0 0.0
        %1190 = vmatprep.subr.mxu0 0.0
        %1191 = vmatpush1.msra.mxu0 0.0
        %1192 = vmatprep.subr.mxu0 0.0
        %1193 = vmatpush1.msra.mxu0 0.0
        %1194 = vmatprep.subr.mxu0 0.0
        %1195 = vmatpush1.msra.mxu0 0.0
        %1196 = vmatprep.subr.mxu0 0.0
        %1197 = vmatpush1.msra.mxu0 0.0
        %1198 = vmatprep.subr.mxu0 0.0
        %1199 = vmatpush1.msra.mxu0 0.0
        %1200 = vmatprep.subr.mxu0 0.0
        %1201 = vmatpush1.msra.mxu0 0.0
        %1202 = vmatprep.subr.mxu0 0.0
        %1203 = vmatpush1.msra.mxu0 0.0
        %1204 = vmatprep.subr.mxu0 0.0
        %1205 = vmatpush1.msra.mxu0 0.0
        %1206 = vmatprep.subr.mxu0 0.0
        %1207 = vmatpush1.msra.mxu0 0.0
        %1208 = vmatprep.subr.mxu0 0.0
        %1209 = vmatpush1.msra.mxu0 0.0
        %1210 = vmatprep.subr.mxu0 0.0
        %1211 = vmatpush1.msra.mxu0 0.0
        %1212 = vmatprep.subr.mxu0 0.0
        %1213 = vmatpush1.msra.mxu0 0.0
        %1214 = vmatprep.subr.mxu0 0.0
        %1215 = vmatpush1.msra.mxu0 0.0
        %1216 = vmatprep.mubr.f32.mxu0 0.0
        %1217 = vmatmul.mubr.f32.gmra.mrb[0].mxu0 %v672
        %v1218 = vpop.f32.mrb[0].mxu0
        %v1219 = vadd.f32 0.0, %v1218
        %v1220 = vpop.f32.mrb[0].mxu0
        %1221 = vdwg.mxu0
        %1222 = vmatprep.subr.mxu0 0.0
        %1223 = vmatpush1.msra.mxu0 %v1120
        %1224 = vmatprep.subr.mxu0 0.0
        %1225 = vmatpush1.msra.mxu0 %v1121
        %1226 = vmatprep.subr.mxu0 0.0
        %1227 = vmatpush1.msra.mxu0 %v1122
        %1228 = vmatprep.subr.mxu0 0.0
        %1229 = vmatpush1.msra.mxu0 %v1123
        %1230 = vmatprep.subr.mxu0 0.0
        %1231 = vmatpush1.msra.mxu0 %v1124
        %1232 = vmatprep.subr.mxu0 0.0
        %1233 = vmatpush1.msra.mxu0 %v1125
        %1234 = vmatprep.subr.mxu0 0.0
        %1235 = vmatpush1.msra.mxu0 %v1126
        %1236 = vmatprep.subr.mxu0 0.0
        %1237 = vmatpush1.msra.mxu0 %v1127
        %1238 = vmatprep.subr.mxu0 0.0
        %1239 = vmatpush1.msra.mxu0 %v1128
        %1240 = vmatprep.subr.mxu0 0.0
        %1241 = vmatpush1.msra.mxu0 %v1129
        %1242 = vmatprep.subr.mxu0 0.0
        %1243 = vmatpush1.msra.mxu0 %v1130
        %1244 = vmatprep.subr.mxu0 0.0
        %1245 = vmatpush1.msra.mxu0 %v1131
        %1246 = vmatprep.subr.mxu0 0.0
        %1247 = vmatpush1.msra.mxu0 %v1132
        %1248 = vmatprep.subr.mxu0 0.0
        %1249 = vmatpush1.msra.mxu0 %v1133
        %1250 = vmatprep.subr.mxu0 0.0
        %1251 = vmatpush1.msra.mxu0 %v1134
        %1252 = vmatprep.subr.mxu0 0.0
        %1253 = vmatpush1.msra.mxu0 %v1135
        %1254 = vmatprep.subr.mxu0 0.0
        %1255 = vmatpush1.msra.mxu0 0.0
        %1256 = vmatprep.subr.mxu0 0.0
        %1257 = vmatpush1.msra.mxu0 0.0
        %1258 = vmatprep.subr.mxu0 0.0
        %1259 = vmatpush1.msra.mxu0 0.0
        %1260 = vmatprep.subr.mxu0 0.0
        %1261 = vmatpush1.msra.mxu0 0.0
        %1262 = vmatprep.subr.mxu0 0.0
        %1263 = vmatpush1.msra.mxu0 0.0
        %1264 = vmatprep.subr.mxu0 0.0
        %1265 = vmatpush1.msra.mxu0 0.0
        %1266 = vmatprep.subr.mxu0 0.0
        %1267 = vmatpush1.msra.mxu0 0.0
        %1268 = vmatprep.subr.mxu0 0.0
        %1269 = vmatpush1.msra.mxu0 0.0
        %1270 = vmatprep.subr.mxu0 0.0
        %1271 = vmatpush1.msra.mxu0 0.0
        %1272 = vmatprep.subr.mxu0 0.0
        %1273 = vmatpush1.msra.mxu0 0.0
        %1274 = vmatprep.subr.mxu0 0.0
        %1275 = vmatpush1.msra.mxu0 0.0
        %1276 = vmatprep.subr.mxu0 0.0
        %1277 = vmatpush1.msra.mxu0 0.0
        %1278 = vmatprep.subr.mxu0 0.0
        %1279 = vmatpush1.msra.mxu0 0.0
        %1280 = vmatprep.subr.mxu0 0.0
        %1281 = vmatpush1.msra.mxu0 0.0
        %1282 = vmatprep.subr.mxu0 0.0
        %1283 = vmatpush1.msra.mxu0 0.0
        %1284 = vmatprep.subr.mxu0 0.0
        %1285 = vmatpush1.msra.mxu0 0.0
        %1286 = vmatprep.mubr.f32.mxu0 0.0
        %1287 = vmatmul.mubr.f32.gmra.mrb[0].mxu0 %v1119
        %v1288 = vpop.f32.mrb[0].mxu0
        %v1289 = vadd.f32 %v1219, %v1288
        %v1290 = vpop.f32.mrb[0].mxu0
        %1291 = vdwg.mxu0
        %v1292 = vld [vmem:[%s12] sm:$0x1]
        %v1293 = vadd.f32 %v1289, %v1292
        %v1294 = vxor.u32 %v1293, 2147483648
        %v1295 = vmul.f32 %v1294, 1.442695
        %v1296 = vpow.pop %v1295
        %v1297 = vadd.f32 %v1296, 1.0
        %v1298 = vrcp.pop %v1297
        %v1299 = vmul.f32 1.0, %v1298
        %s1300 = scalar_lea.vmem [#allocation16], 128
        %v1301 = vld [vmem:[%s1300] sm:$0xff]
        %v1302 = vld [vmem:[%s1300 + $0x8] sm:$0xff]
        %v1303 = vld [vmem:[%s1300 + $0x10] sm:$0xff]
        %v1304 = vld [vmem:[%s1300 + $0x18] sm:$0xff]
        %v1305 = vld [vmem:[%s1300 + $0x20] sm:$0xff]
        %v1306 = vld [vmem:[%s1300 + $0x28] sm:$0xff]
        %v1307 = vld [vmem:[%s1300 + $0x30] sm:$0xff]
        %v1308 = vld [vmem:[%s1300 + $0x38] sm:$0xff]
        %v1309 = vld [vmem:[%s1300 + $0x40] sm:$0xff]
        %v1310 = vld [vmem:[%s1300 + $0x48] sm:$0xff]
        %v1311 = vld [vmem:[%s1300 + $0x50] sm:$0xff]
        %v1312 = vld [vmem:[%s1300 + $0x58] sm:$0xff]
        %v1313 = vld [vmem:[%s1300 + $0x60] sm:$0xff]
        %v1314 = vld [vmem:[%s1300 + $0x68] sm:$0xff]
        %v1315 = vld [vmem:[%s1300 + $0x70] sm:$0xff]
        %v1316 = vld [vmem:[%s1300 + $0x78] sm:$0xff]
        %s1317 = scalar_lea.vmem [#allocation17], 128
        %v1318 = vld [vmem:[%s1317] sm:$0xff]
        %v1319 = vld [vmem:[%s1317 + $0x8] sm:$0xff]
        %v1320 = vld [vmem:[%s1317 + $0x10] sm:$0xff]
        %v1321 = vld [vmem:[%s1317 + $0x18] sm:$0xff]
        %v1322 = vld [vmem:[%s1317 + $0x20] sm:$0xff]
        %v1323 = vld [vmem:[%s1317 + $0x28] sm:$0xff]
        %v1324 = vld [vmem:[%s1317 + $0x30] sm:$0xff]
        %v1325 = vld [vmem:[%s1317 + $0x38] sm:$0xff]
        %v1326 = vld [vmem:[%s1317 + $0x40] sm:$0xff]
        %v1327 = vld [vmem:[%s1317 + $0x48] sm:$0xff]
        %v1328 = vld [vmem:[%s1317 + $0x50] sm:$0xff]
        %v1329 = vld [vmem:[%s1317 + $0x58] sm:$0xff]
        %v1330 = vld [vmem:[%s1317 + $0x60] sm:$0xff]
        %v1331 = vld [vmem:[%s1317 + $0x68] sm:$0xff]
        %v1332 = vld [vmem:[%s1317 + $0x70] sm:$0xff]
        %v1333 = vld [vmem:[%s1317 + $0x78] sm:$0xff]
        %1334 = vmatprep.subr.mxu0 0.0
        %1335 = vmatpush1.msra.mxu0 %v1318
        %1336 = vmatprep.subr.mxu0 0.0
        %1337 = vmatpush1.msra.mxu0 %v1319
        %1338 = vmatprep.subr.mxu0 0.0
        %1339 = vmatpush1.msra.mxu0 %v1320
        %1340 = vmatprep.subr.mxu0 0.0
        %1341 = vmatpush1.msra.mxu0 %v1321
        %1342 = vmatprep.subr.mxu0 0.0
        %1343 = vmatpush1.msra.mxu0 %v1322
        %1344 = vmatprep.subr.mxu0 0.0
        %1345 = vmatpush1.msra.mxu0 %v1323
        %1346 = vmatprep.subr.mxu0 0.0
        %1347 = vmatpush1.msra.mxu0 %v1324
        %1348 = vmatprep.subr.mxu0 0.0
        %1349 = vmatpush1.msra.mxu0 %v1325
        %1350 = vmatprep.subr.mxu0 0.0
        %1351 = vmatpush1.msra.mxu0 %v1326
        %1352 = vmatprep.subr.mxu0 0.0
        %1353 = vmatpush1.msra.mxu0 %v1327
        %1354 = vmatprep.subr.mxu0 0.0
        %1355 = vmatpush1.msra.mxu0 %v1328
        %1356 = vmatprep.subr.mxu0 0.0
        %1357 = vmatpush1.msra.mxu0 %v1329
        %1358 = vmatprep.subr.mxu0 0.0
        %1359 = vmatpush1.msra.mxu0 %v1330
        %1360 = vmatprep.subr.mxu0 0.0
        %1361 = vmatpush1.msra.mxu0 %v1331
        %1362 = vmatprep.subr.mxu0 0.0
        %1363 = vmatpush1.msra.mxu0 %v1332
        %1364 = vmatprep.subr.mxu0 0.0
        %1365 = vmatpush1.msra.mxu0 %v1333
        %1366 = vmatprep.subr.mxu0 0.0
        %1367 = vmatpush1.msra.mxu0 0.0
        %1368 = vmatprep.subr.mxu0 0.0
        %1369 = vmatpush1.msra.mxu0 0.0
        %1370 = vmatprep.subr.mxu0 0.0
        %1371 = vmatpush1.msra.mxu0 0.0
        %1372 = vmatprep.subr.mxu0 0.0
        %1373 = vmatpush1.msra.mxu0 0.0
        %1374 = vmatprep.subr.mxu0 0.0
        %1375 = vmatpush1.msra.mxu0 0.0
        %1376 = vmatprep.subr.mxu0 0.0
        %1377 = vmatpush1.msra.mxu0 0.0
        %1378 = vmatprep.subr.mxu0 0.0
        %1379 = vmatpush1.msra.mxu0 0.0
        %1380 = vmatprep.subr.mxu0 0.0
        %1381 = vmatpush1.msra.mxu0 0.0
        %1382 = vmatprep.subr.mxu0 0.0
        %1383 = vmatpush1.msra.mxu0 0.0
        %1384 = vmatprep.subr.mxu0 0.0
        %1385 = vmatpush1.msra.mxu0 0.0
        %1386 = vmatprep.subr.mxu0 0.0
        %1387 = vmatpush1.msra.mxu0 0.0
        %1388 = vmatprep.subr.mxu0 0.0
        %1389 = vmatpush1.msra.mxu0 0.0
        %1390 = vmatprep.subr.mxu0 0.0
        %1391 = vmatpush1.msra.mxu0 0.0
        %1392 = vmatprep.subr.mxu0 0.0
        %1393 = vmatpush1.msra.mxu0 0.0
        %1394 = vmatprep.subr.mxu0 0.0
        %1395 = vmatpush1.msra.mxu0 0.0
        %1396 = vmatprep.subr.mxu0 0.0
        %1397 = vmatpush1.msra.mxu0 0.0
        %1398 = vmatprep.mubr.f32.mxu0 0.0
        %1399 = vmatmul.mubr.f32.gmra.mrb[0].mxu0 %v672
        %v1400 = vpop.f32.mrb[0].mxu0
        %v1401 = vadd.f32 0.0, %v1400
        %v1402 = vpop.f32.mrb[0].mxu0
        %1403 = vdwg.mxu0
        %1404 = vmatprep.subr.mxu0 0.0
        %1405 = vmatpush1.msra.mxu0 %v1301
        %1406 = vmatprep.subr.mxu0 0.0
        %1407 = vmatpush1.msra.mxu0 %v1302
        %1408 = vmatprep.subr.mxu0 0.0
        %1409 = vmatpush1.msra.mxu0 %v1303
        %1410 = vmatprep.subr.mxu0 0.0
        %1411 = vmatpush1.msra.mxu0 %v1304
        %1412 = vmatprep.subr.mxu0 0.0
        %1413 = vmatpush1.msra.mxu0 %v1305
        %1414 = vmatprep.subr.mxu0 0.0
        %1415 = vmatpush1.msra.mxu0 %v1306
        %1416 = vmatprep.subr.mxu0 0.0
        %1417 = vmatpush1.msra.mxu0 %v1307
        %1418 = vmatprep.subr.mxu0 0.0
        %1419 = vmatpush1.msra.mxu0 %v1308
        %1420 = vmatprep.subr.mxu0 0.0
        %1421 = vmatpush1.msra.mxu0 %v1309
        %1422 = vmatprep.subr.mxu0 0.0
        %1423 = vmatpush1.msra.mxu0 %v1310
        %1424 = vmatprep.subr.mxu0 0.0
        %1425 = vmatpush1.msra.mxu0 %v1311
        %1426 = vmatprep.subr.mxu0 0.0
        %1427 = vmatpush1.msra.mxu0 %v1312
        %1428 = vmatprep.subr.mxu0 0.0
        %1429 = vmatpush1.msra.mxu0 %v1313
        %1430 = vmatprep.subr.mxu0 0.0
        %1431 = vmatpush1.msra.mxu0 %v1314
        %1432 = vmatprep.subr.mxu0 0.0
        %1433 = vmatpush1.msra.mxu0 %v1315
        %1434 = vmatprep.subr.mxu0 0.0
        %1435 = vmatpush1.msra.mxu0 %v1316
        %1436 = vmatprep.subr.mxu0 0.0
        %1437 = vmatpush1.msra.mxu0 0.0
        %1438 = vmatprep.subr.mxu0 0.0
        %1439 = vmatpush1.msra.mxu0 0.0
        %1440 = vmatprep.subr.mxu0 0.0
        %1441 = vmatpush1.msra.mxu0 0.0
        %1442 = vmatprep.subr.mxu0 0.0
        %1443 = vmatpush1.msra.mxu0 0.0
        %1444 = vmatprep.subr.mxu0 0.0
        %1445 = vmatpush1.msra.mxu0 0.0
        %1446 = vmatprep.subr.mxu0 0.0
        %1447 = vmatpush1.msra.mxu0 0.0
        %1448 = vmatprep.subr.mxu0 0.0
        %1449 = vmatpush1.msra.mxu0 0.0
        %1450 = vmatprep.subr.mxu0 0.0
        %1451 = vmatpush1.msra.mxu0 0.0
        %1452 = vmatprep.subr.mxu0 0.0
        %1453 = vmatpush1.msra.mxu0 0.0
        %1454 = vmatprep.subr.mxu0 0.0
        %1455 = vmatpush1.msra.mxu0 0.0
        %1456 = vmatprep.subr.mxu0 0.0
        %1457 = vmatpush1.msra.mxu0 0.0
        %1458 = vmatprep.subr.mxu0 0.0
        %1459 = vmatpush1.msra.mxu0 0.0
        %1460 = vmatprep.subr.mxu0 0.0
        %1461 = vmatpush1.msra.mxu0 0.0
        %1462 = vmatprep.subr.mxu0 0.0
        %1463 = vmatpush1.msra.mxu0 0.0
        %1464 = vmatprep.subr.mxu0 0.0
        %1465 = vmatpush1.msra.mxu0 0.0
        %1466 = vmatprep.subr.mxu0 0.0
        %1467 = vmatpush1.msra.mxu0 0.0
        %1468 = vmatprep.mubr.f32.mxu0 0.0
        %1469 = vmatmul.mubr.f32.gmra.mrb[0].mxu0 %v1119
        %v1470 = vpop.f32.mrb[0].mxu0
        %v1471 = vadd.f32 %v1401, %v1470
        %v1472 = vpop.f32.mrb[0].mxu0
        %1473 = vdwg.mxu0
        %s1474 = scalar_lea.vmem %s12, 1
        %v1475 = vld [vmem:[%s1474] sm:$0x1]
        %v1476 = vadd.f32 %v1471, %v1475
        %v1477 = vxor.u32 %v1476, 2147483648
        %v1478 = vmul.f32 %v1477, 1.442695
        %v1479 = vpow.pop %v1478
        %v1480 = vadd.f32 %v1479, 1.0
        %v1481 = vrcp.pop %v1480
        %v1482 = vmul.f32 1.0, %v1481
        %s1483 = scalar_lea.vmem [#allocation16], 256
        %v1484 = vld [vmem:[%s1483] sm:$0xff]
        %v1485 = vld [vmem:[%s1483 + $0x8] sm:$0xff]
        %v1486 = vld [vmem:[%s1483 + $0x10] sm:$0xff]
        %v1487 = vld [vmem:[%s1483 + $0x18] sm:$0xff]
        %v1488 = vld [vmem:[%s1483 + $0x20] sm:$0xff]
        %v1489 = vld [vmem:[%s1483 + $0x28] sm:$0xff]
        %v1490 = vld [vmem:[%s1483 + $0x30] sm:$0xff]
        %v1491 = vld [vmem:[%s1483 + $0x38] sm:$0xff]
        %v1492 = vld [vmem:[%s1483 + $0x40] sm:$0xff]
        %v1493 = vld [vmem:[%s1483 + $0x48] sm:$0xff]
        %v1494 = vld [vmem:[%s1483 + $0x50] sm:$0xff]
        %v1495 = vld [vmem:[%s1483 + $0x58] sm:$0xff]
        %v1496 = vld [vmem:[%s1483 + $0x60] sm:$0xff]
        %v1497 = vld [vmem:[%s1483 + $0x68] sm:$0xff]
        %v1498 = vld [vmem:[%s1483 + $0x70] sm:$0xff]
        %v1499 = vld [vmem:[%s1483 + $0x78] sm:$0xff]
        %s1500 = scalar_lea.vmem %s12, 2
        %v1501 = vld [vmem:[%s1500] sm:$0x1]
        %1502 = vmatprep.subr.mxu0 0.0
        %1503 = vmatpush1.msra.mxu0 %v1484
        %1504 = vmatprep.subr.mxu0 0.0
        %1505 = vmatpush1.msra.mxu0 %v1485
        %1506 = vmatprep.subr.mxu0 0.0
        %1507 = vmatpush1.msra.mxu0 %v1486
        %1508 = vmatprep.subr.mxu0 0.0
        %1509 = vmatpush1.msra.mxu0 %v1487
        %1510 = vmatprep.subr.mxu0 0.0
        %1511 = vmatpush1.msra.mxu0 %v1488
        %1512 = vmatprep.subr.mxu0 0.0
        %1513 = vmatpush1.msra.mxu0 %v1489
        %1514 = vmatprep.subr.mxu0 0.0
        %1515 = vmatpush1.msra.mxu0 %v1490
        %1516 = vmatprep.subr.mxu0 0.0
        %1517 = vmatpush1.msra.mxu0 %v1491
        %1518 = vmatprep.subr.mxu0 0.0
        %1519 = vmatpush1.msra.mxu0 %v1492
        %1520 = vmatprep.subr.mxu0 0.0
        %1521 = vmatpush1.msra.mxu0 %v1493
        %1522 = vmatprep.subr.mxu0 0.0
        %1523 = vmatpush1.msra.mxu0 %v1494
        %1524 = vmatprep.subr.mxu0 0.0
        %1525 = vmatpush1.msra.mxu0 %v1495
        %1526 = vmatprep.subr.mxu0 0.0
        %1527 = vmatpush1.msra.mxu0 %v1496
        %1528 = vmatprep.subr.mxu0 0.0
        %1529 = vmatpush1.msra.mxu0 %v1497
        %1530 = vmatprep.subr.mxu0 0.0
        %1531 = vmatpush1.msra.mxu0 %v1498
        %1532 = vmatprep.subr.mxu0 0.0
        %1533 = vmatpush1.msra.mxu0 %v1499
        %1534 = vmatprep.subr.mxu0 0.0
        %1535 = vmatpush1.msra.mxu0 0.0
        %1536 = vmatprep.subr.mxu0 0.0
        %1537 = vmatpush1.msra.mxu0 0.0
        %1538 = vmatprep.subr.mxu0 0.0
        %1539 = vmatpush1.msra.mxu0 0.0
        %1540 = vmatprep.subr.mxu0 0.0
        %1541 = vmatpush1.msra.mxu0 0.0
        %1542 = vmatprep.subr.mxu0 0.0
        %1543 = vmatpush1.msra.mxu0 0.0
        %1544 = vmatprep.subr.mxu0 0.0
        %1545 = vmatpush1.msra.mxu0 0.0
        %1546 = vmatprep.subr.mxu0 0.0
        %1547 = vmatpush1.msra.mxu0 0.0
        %1548 = vmatprep.subr.mxu0 0.0
        %1549 = vmatpush1.msra.mxu0 0.0
        %1550 = vmatprep.subr.mxu0 0.0
        %1551 = vmatpush1.msra.mxu0 0.0
        %1552 = vmatprep.subr.mxu0 0.0
        %1553 = vmatpush1.msra.mxu0 0.0
        %1554 = vmatprep.subr.mxu0 0.0
        %1555 = vmatpush1.msra.mxu0 0.0
        %1556 = vmatprep.subr.mxu0 0.0
        %1557 = vmatpush1.msra.mxu0 0.0
        %1558 = vmatprep.subr.mxu0 0.0
        %1559 = vmatpush1.msra.mxu0 0.0
        %1560 = vmatprep.subr.mxu0 0.0
        %1561 = vmatpush1.msra.mxu0 0.0
        %1562 = vmatprep.subr.mxu0 0.0
        %1563 = vmatpush1.msra.mxu0 0.0
        %1564 = vmatprep.subr.mxu0 0.0
        %1565 = vmatpush1.msra.mxu0 0.0
        %1566 = vmatprep.mubr.f32.mxu0 0.0
        %1567 = vmatmul.mubr.f32.gmra.mrb[0].mxu0 %v1119
        %v1568 = vpop.f32.mrb[0].mxu0
        %v1569 = vadd.f32 %v1501, %v1568
        %v1570 = vpop.f32.mrb[0].mxu0
        %1571 = vdwg.mxu0
        %s1572 = scalar_lea.vmem [#allocation17], 256
        %v1573 = vld [vmem:[%s1572] sm:$0xff]
        %v1574 = vld [vmem:[%s1572 + $0x8] sm:$0xff]
        %v1575 = vld [vmem:[%s1572 + $0x10] sm:$0xff]
        %v1576 = vld [vmem:[%s1572 + $0x18] sm:$0xff]
        %v1577 = vld [vmem:[%s1572 + $0x20] sm:$0xff]
        %v1578 = vld [vmem:[%s1572 + $0x28] sm:$0xff]
        %v1579 = vld [vmem:[%s1572 + $0x30] sm:$0xff]
        %v1580 = vld [vmem:[%s1572 + $0x38] sm:$0xff]
        %v1581 = vld [vmem:[%s1572 + $0x40] sm:$0xff]
        %v1582 = vld [vmem:[%s1572 + $0x48] sm:$0xff]
        %v1583 = vld [vmem:[%s1572 + $0x50] sm:$0xff]
        %v1584 = vld [vmem:[%s1572 + $0x58] sm:$0xff]
        %v1585 = vld [vmem:[%s1572 + $0x60] sm:$0xff]
        %v1586 = vld [vmem:[%s1572 + $0x68] sm:$0xff]
        %v1587 = vld [vmem:[%s1572 + $0x70] sm:$0xff]
        %v1588 = vld [vmem:[%s1572 + $0x78] sm:$0xff]
        %s1589 = scalar_lea.vmem %s12, 3
        %v1590 = vld [vmem:[%s1589] sm:$0x1]
        %1591 = vmatprep.subr.mxu0 0.0
        %1592 = vmatpush1.msra.mxu0 %v1573
        %1593 = vmatprep.subr.mxu0 0.0
        %1594 = vmatpush1.msra.mxu0 %v1574
        %1595 = vmatprep.subr.mxu0 0.0
        %1596 = vmatpush1.msra.mxu0 %v1575
        %1597 = vmatprep.subr.mxu0 0.0
        %1598 = vmatpush1.msra.mxu0 %v1576
        %1599 = vmatprep.subr.mxu0 0.0
        %1600 = vmatpush1.msra.mxu0 %v1577
        %1601 = vmatprep.subr.mxu0 0.0
        %1602 = vmatpush1.msra.mxu0 %v1578
        %1603 = vmatprep.subr.mxu0 0.0
        %1604 = vmatpush1.msra.mxu0 %v1579
        %1605 = vmatprep.subr.mxu0 0.0
        %1606 = vmatpush1.msra.mxu0 %v1580
        %1607 = vmatprep.subr.mxu0 0.0
        %1608 = vmatpush1.msra.mxu0 %v1581
        %1609 = vmatprep.subr.mxu0 0.0
        %1610 = vmatpush1.msra.mxu0 %v1582
        %1611 = vmatprep.subr.mxu0 0.0
        %1612 = vmatpush1.msra.mxu0 %v1583
        %1613 = vmatprep.subr.mxu0 0.0
        %1614 = vmatpush1.msra.mxu0 %v1584
        %1615 = vmatprep.subr.mxu0 0.0
        %1616 = vmatpush1.msra.mxu0 %v1585
        %1617 = vmatprep.subr.mxu0 0.0
        %1618 = vmatpush1.msra.mxu0 %v1586
        %1619 = vmatprep.subr.mxu0 0.0
        %1620 = vmatpush1.msra.mxu0 %v1587
        %1621 = vmatprep.subr.mxu0 0.0
        %1622 = vmatpush1.msra.mxu0 %v1588
        %1623 = vmatprep.subr.mxu0 0.0
        %1624 = vmatpush1.msra.mxu0 0.0
        %1625 = vmatprep.subr.mxu0 0.0
        %1626 = vmatpush1.msra.mxu0 0.0
        %1627 = vmatprep.subr.mxu0 0.0
        %1628 = vmatpush1.msra.mxu0 0.0
        %1629 = vmatprep.subr.mxu0 0.0
        %1630 = vmatpush1.msra.mxu0 0.0
        %1631 = vmatprep.subr.mxu0 0.0
        %1632 = vmatpush1.msra.mxu0 0.0
        %1633 = vmatprep.subr.mxu0 0.0
        %1634 = vmatpush1.msra.mxu0 0.0
        %1635 = vmatprep.subr.mxu0 0.0
        %1636 = vmatpush1.msra.mxu0 0.0
        %1637 = vmatprep.subr.mxu0 0.0
        %1638 = vmatpush1.msra.mxu0 0.0
        %1639 = vmatprep.subr.mxu0 0.0
        %1640 = vmatpush1.msra.mxu0 0.0
        %1641 = vmatprep.subr.mxu0 0.0
        %1642 = vmatpush1.msra.mxu0 0.0
        %1643 = vmatprep.subr.mxu0 0.0
        %1644 = vmatpush1.msra.mxu0 0.0
        %1645 = vmatprep.subr.mxu0 0.0
        %1646 = vmatpush1.msra.mxu0 0.0
        %1647 = vmatprep.subr.mxu0 0.0
        %1648 = vmatpush1.msra.mxu0 0.0
        %1649 = vmatprep.subr.mxu0 0.0
        %1650 = vmatpush1.msra.mxu0 0.0
        %1651 = vmatprep.subr.mxu0 0.0
        %1652 = vmatpush1.msra.mxu0 0.0
        %1653 = vmatprep.subr.mxu0 0.0
        %1654 = vmatpush1.msra.mxu0 0.0
        %1655 = vmatprep.mubr.f32.mxu0 0.0
        %1656 = vmatmul.mubr.f32.gmra.mrb[0].mxu0 %v672
        %v1657 = vpop.f32.mrb[0].mxu0
        %v1658 = vadd.f32 %v1590, %v1657
        %v1659 = vpop.f32.mrb[0].mxu0
        %1660 = vdwg.mxu0
        %v1661 = vmul.f32 %v1299, %v1658
        %v1662 = vadd.f32 %v1569, %v1661
        %v1663 = vtanh.pop %v1662
        %v1664 = vsub.f32 1.0, %v1482
        %v1665 = vmul.f32 %v1664, %v1663
        %v1666 = vmul.f32 %v1482, %v672
        %v1667 = vadd.f32 %v1665, %v1666
        %1668 = vst [vmem:[#allocation2] sm:$0x1] %v1667
        %1669 = vst [vmem:[#allocation23] sm:$0x1] %v1667
        %v1670 = vld [vmem:[#allocation19] sm:$0xff]
        %v1671 = vld [vmem:[#allocation19 + $0x8] sm:$0xff]
        %v1672 = vld [vmem:[#allocation19 + $0x10] sm:$0xff]
        %v1673 = vld [vmem:[#allocation19 + $0x18] sm:$0xff]
        %v1674 = vld [vmem:[#allocation19 + $0x20] sm:$0xff]
        %v1675 = vld [vmem:[#allocation19 + $0x28] sm:$0xff]
        %v1676 = vld [vmem:[#allocation19 + $0x30] sm:$0xff]
        %v1677 = vld [vmem:[#allocation19 + $0x38] sm:$0xff]
        %v1678 = vld [vmem:[#allocation19 + $0x40] sm:$0xff]
        %v1679 = vld [vmem:[#allocation19 + $0x48] sm:$0xff]
        %v1680 = vld [vmem:[#allocation19 + $0x50] sm:$0xff]
        %v1681 = vld [vmem:[#allocation19 + $0x58] sm:$0xff]
        %v1682 = vld [vmem:[#allocation19 + $0x60] sm:$0xff]
        %v1683 = vld [vmem:[#allocation19 + $0x68] sm:$0xff]
        %v1684 = vld [vmem:[#allocation19 + $0x70] sm:$0xff]
        %v1685 = vld [vmem:[#allocation19 + $0x78] sm:$0xff]
        %v1686 = vld [vmem:[%s14] sm:$0x1]
        %1687 = vmatprep.subr.mxu0 0.0
        %1688 = vmatpush1.msra.mxu0 %v1670
        %1689 = vmatprep.subr.mxu0 0.0
        %1690 = vmatpush1.msra.mxu0 %v1671
        %1691 = vmatprep.subr.mxu0 0.0
        %1692 = vmatpush1.msra.mxu0 %v1672
        %1693 = vmatprep.subr.mxu0 0.0
        %1694 = vmatpush1.msra.mxu0 %v1673
        %1695 = vmatprep.subr.mxu0 0.0
        %1696 = vmatpush1.msra.mxu0 %v1674
        %1697 = vmatprep.subr.mxu0 0.0
        %1698 = vmatpush1.msra.mxu0 %v1675
        %1699 = vmatprep.subr.mxu0 0.0
        %1700 = vmatpush1.msra.mxu0 %v1676
        %1701 = vmatprep.subr.mxu0 0.0
        %1702 = vmatpush1.msra.mxu0 %v1677
        %1703 = vmatprep.subr.mxu0 0.0
        %1704 = vmatpush1.msra.mxu0 %v1678
        %1705 = vmatprep.subr.mxu0 0.0
        %1706 = vmatpush1.msra.mxu0 %v1679
        %1707 = vmatprep.subr.mxu0 0.0
        %1708 = vmatpush1.msra.mxu0 %v1680
        %1709 = vmatprep.subr.mxu0 0.0
        %1710 = vmatpush1.msra.mxu0 %v1681
        %1711 = vmatprep.subr.mxu0 0.0
        %1712 = vmatpush1.msra.mxu0 %v1682
        %1713 = vmatprep.subr.mxu0 0.0
        %1714 = vmatpush1.msra.mxu0 %v1683
        %1715 = vmatprep.subr.mxu0 0.0
        %1716 = vmatpush1.msra.mxu0 %v1684
        %1717 = vmatprep.subr.mxu0 0.0
        %1718 = vmatpush1.msra.mxu0 %v1685
        %1719 = vmatprep.subr.mxu0 0.0
        %1720 = vmatpush1.msra.mxu0 0.0
        %1721 = vmatprep.subr.mxu0 0.0
        %1722 = vmatpush1.msra.mxu0 0.0
        %1723 = vmatprep.subr.mxu0 0.0
        %1724 = vmatpush1.msra.mxu0 0.0
        %1725 = vmatprep.subr.mxu0 0.0
        %1726 = vmatpush1.msra.mxu0 0.0
        %1727 = vmatprep.subr.mxu0 0.0
        %1728 = vmatpush1.msra.mxu0 0.0
        %1729 = vmatprep.subr.mxu0 0.0
        %1730 = vmatpush1.msra.mxu0 0.0
        %1731 = vmatprep.subr.mxu0 0.0
        %1732 = vmatpush1.msra.mxu0 0.0
        %1733 = vmatprep.subr.mxu0 0.0
        %1734 = vmatpush1.msra.mxu0 0.0
        %1735 = vmatprep.subr.mxu0 0.0
        %1736 = vmatpush1.msra.mxu0 0.0
        %1737 = vmatprep.subr.mxu0 0.0
        %1738 = vmatpush1.msra.mxu0 0.0
        %1739 = vmatprep.subr.mxu0 0.0
        %1740 = vmatpush1.msra.mxu0 0.0
        %1741 = vmatprep.subr.mxu0 0.0
        %1742 = vmatpush1.msra.mxu0 0.0
        %1743 = vmatprep.subr.mxu0 0.0
        %1744 = vmatpush1.msra.mxu0 0.0
        %1745 = vmatprep.subr.mxu0 0.0
        %1746 = vmatpush1.msra.mxu0 0.0
        %1747 = vmatprep.subr.mxu0 0.0
        %1748 = vmatpush1.msra.mxu0 0.0
        %1749 = vmatprep.subr.mxu0 0.0
        %1750 = vmatpush1.msra.mxu0 0.0
        %1751 = vmatprep.mubr.f32.mxu0 0.0
        %1752 = vmatmul.mubr.f32.gmra.mrb[0].mxu0 %v1667
        %v1753 = vpop.f32.mrb[0].mxu0
        %v1754 = vadd.f32 %v1686, %v1753
        %v1755 = vpop.f32.mrb[0].mxu0
        %1756 = vdwg.mxu0
        %v1757 = vsel %vm847, %v1754, -inf
        %1758 = vmax.xlane.f32.xlu0 %v1757
        %v1759 = vpop.xlane.xlu0 %1758
        %v1760 = vsub.f32 %v1754, %v1759
        %v1761 = vmul.f32 %v1760, 1.442695
        %v1762 = vpow.pop %v1761
        %v1763 = vsel %vm847, %v1762, 0.0
        %1764 = vadd.xlane.f32.xlu0 %v1763
        %v1765 = vpop.xlane.xlu0 %1764
        %v1766 = vlog2.pop %v1765
        %v1767 = vmul.f32 %v1766, 0.6931472
        %v1768 = vsub.f32 %v1760, %v1767
        %1769 = vst [vmem:[%s655] sm:$0x1] %v1768
        %1770 = vst [vmem:[%s661] sm:$0x1] %v858
        %s1771 = sand.u32 %s355, 1
        %s1772 = scalar_lea.sflag [#allocation7], %s1771
        %s1773 = sand.u32 %s355, 1
        %s1774 = scalar_lea.vmem [#allocation20], %s1773
        %s1775 = sand.u32 %s46, 1
        %s1776 = scalar_lea.sflag [#allocation22], %s1775
        %s1777 = sand.u32 %s381, 1
        %s1778 = scalar_lea.vmem [#allocation21], %s1777
        // Predicated region
        $region117: #{tpu_custom_call.1} parent=75 // pred_check
          %p1779 = pneg %p365
        $region118: #{tpu_custom_call.1} parent=75 // pred_check_branch
          %1781 = sbr.rel (%p1779) target = $region120
        $region119: #{tpu_custom_call.1} parent=75 // pred_region
          %s1783 = ssub.s32 16, 16
          %1784 = vsyncadd %s1772, %s1783
          %s1785 = smul.addr %s46, 16
          %s1786 = scalar_lea.hbm %s15, %s1785
          %s1788 = sshll.u32 %s1774, 4
          %s1789 = int_to_ptr.vmem [resolvable:$true] %s1788
          %1791 = dma.vmem_to_hbm [thread:$0]  %s1789, 16, %s1786, %s1772
        $region120: #{tpu_custom_call.1} parent=75 // pred_fallthru
          _
        // Predicated region
        $region121: #{tpu_custom_call.1} parent=75 // pred_check
          %p1792 = pneg %p391
        $region122: #{tpu_custom_call.1} parent=75 // pred_check_branch
          %1794 = sbr.rel (%p1792) target = $region124
        $region123: #{tpu_custom_call.1} parent=75 // pred_region
          %s1796 = ssub.s32 16, 16
          %1797 = vsyncadd %s1776, %s1796
          %s1798 = smul.addr %s46, 16
          %s1799 = scalar_lea.hbm %s16, %s1798
          %s1801 = sshll.u32 %s1778, 4
          %s1802 = int_to_ptr.vmem [resolvable:$true] %s1801
          %1804 = dma.vmem_to_hbm [thread:$0]  %s1802, 16, %s1799, %s1776
        $region124: #{tpu_custom_call.1} parent=75 // pred_fallthru
          _
        // Predicated region
        $region125: #{tpu_custom_call.1} parent=75 // pred_check
          %p1805 = pneg %p412
        $region126: #{tpu_custom_call.1} parent=75 // pred_check_branch
          %1807 = sbr.rel (%p1805) target = $region128
        $region127: #{tpu_custom_call.1} parent=75 // pred_region
          %s1809 = ssub.s32 16, 16
          %1810 = vsyncadd [#allocation22], %s1809
          %s1812 = sshll.u32 [#allocation23], 4
          %s1813 = int_to_ptr.vmem [resolvable:$true] %s1812
          %1815 = dma.vmem_to_hbm [thread:$0]  %s1813, 16, %s17, [#allocation22]
        $region128: #{tpu_custom_call.1} parent=75 // pred_fallthru
          _
        // Predicated region
        $region129: #{tpu_custom_call.1} parent=75 // pred_check
          %p1816 = pneg %p412
        $region130: #{tpu_custom_call.1} parent=75 // pred_check_branch
          %1818 = sbr.rel (%p1816) target = $region132
        $region131: #{tpu_custom_call.1} parent=75 // pred_region
          %1819 = dma.done [#allocation22], 16
        $region132: #{tpu_custom_call.1} parent=75 // pred_fallthru
          _
      $region76: #{tpu_custom_call.1} parent=5 // pred_fallthru
        _
      %p1820 = scmp.le.s32.totalorder 2, %s41
      // Predicated region
      $region133: #{tpu_custom_call.1} parent=5 // pred_check
        %p1821 = pneg %p1820
      $region134: #{tpu_custom_call.1} parent=5 // pred_check_branch
        %1823 = sbr.rel (%p1821) target = $region136
      $region135: #{tpu_custom_call.1} parent=5 // pred_region
        %s1824 = ssub.s32 %s41, 2
        // Predicated region
        $region137: #{tpu_custom_call.1} parent=135 // pred_check
          %p1825 = pneg %p371
        $region138: #{tpu_custom_call.1} parent=135 // pred_check_branch
          %1827 = sbr.rel (%p1825) target = $region140
        $region139: #{tpu_custom_call.1} parent=135 // pred_region
          %s1828 = sand.u32 %s356, 1
          %s1829 = scalar_lea.sflag [#allocation7], %s1828
          %s1830 = sand.u32 %s356, 1
          %s1831 = scalar_lea.vmem [#allocation20], %s1830
          %1832 = dma.done %s1829, 16
        $region140: #{tpu_custom_call.1} parent=135 // pred_fallthru
          _
        // Predicated region
        $region141: #{tpu_custom_call.1} parent=135 // pred_check
          %p1833 = pneg %p397
        $region142: #{tpu_custom_call.1} parent=135 // pred_check_branch
          %1835 = sbr.rel (%p1833) target = $region144
        $region143: #{tpu_custom_call.1} parent=135 // pred_region
          %s1836 = sand.u32 %s47, 1
          %s1837 = scalar_lea.sflag [#allocation22], %s1836
          %s1838 = sand.u32 %s382, 1
          %s1839 = scalar_lea.vmem [#allocation21], %s1838
          %1840 = dma.done %s1837, 16
        $region144: #{tpu_custom_call.1} parent=135 // pred_fallthru
          _
      $region136: #{tpu_custom_call.1} parent=5 // pred_fallthru
        _
    $region6: #{tpu_custom_call.1} parent=1 // loop_footer
      %s45 = sadd.s32 1, %s41
    $region7: #{tpu_custom_call.1} parent=1 // loop_footer_branch
      %40 = sbr.rel target = $region3
    $region8: #{tpu_custom_call.1} parent=1 // loop_exit
      _
    %1841 = vsyncpa [#allocation6], 1
    %s1842 = scalar_lea.sflag [#allocation6], 1
    %1843 = vsyncpa %s1842, 1
    %1844 = vsyncpa [#allocation9], 1
    %1845 = vsyncpa [#allocation12], 1
    %1846 = vsyncpa [#allocation15], 1
    %1847 = vsyncpa [#allocation18], 1
    %1848 = vsyncpa [#allocation7], 1
    %s1849 = scalar_lea.sflag [#allocation7], 1
    %1850 = vsyncpa %s1849, 1
    %1851 = vsyncpa [#allocation22], 1
    %s1852 = scalar_lea.sflag [#allocation22], 1
    %1853 = vsyncpa %s1852, 1

</llo_original>
